<compile_context>
chip_gen: v5e
topology: v5e:2x2
jax: 0.10.0
libtpu: 0.0.40
codegen_flags: <defaults>
</compile_context>

<pallas_src>
import functools
import math

import jax
import jax.numpy as jnp
from jax.experimental import pallas as pl
from jax.experimental.pallas import tpu as pltpu


def aligned_kernel(low_ref, hfe_ref, wl_ref, wh_ref, wf_ref, up_ref,
                   colq_ref, rowdat_ref, out_ref, padf_ref,
                   *, h, w, hh, wh_sz, cout, off):
    hw = h * w
    c2 = 2 * cout
    zpad = w + 1

    low_t = low_ref[0]                    # (cin, hw)  channels-first low_feature
    hfe_t = hfe_ref[0]                    # (cin, qn)  channels-first original h_feature

    # --- 1x1 projections (down_l / down_h), channels-first ---
    low_p = jnp.dot(wl_ref[...], low_t, preferred_element_type=jnp.float32)   # (cout, hw)
    h_p = jnp.dot(wh_ref[...], hfe_t, preferred_element_type=jnp.float32)     # (cout, qn)

    # --- bilinear upsample (align_corners=True) via precomputed static matrix ---
    h_up = jnp.dot(h_p, up_ref[...], preferred_element_type=jnp.float32)      # (cout, hw)

    # --- 3x3 flow_make conv over concat([h_up, low_p]) with zero padding ---
    # Zero only the (w+1)-wide strips the shifted reads can touch (core-safe, cheap);
    # the interior [off:off+hw] is fully overwritten every grid step.
    padf_ref[:, off - zpad:off] = jnp.zeros((c2, zpad), jnp.float32)
    padf_ref[:, off + hw:off + hw + zpad] = jnp.zeros((c2, zpad), jnp.float32)
    padf_ref[0:cout, off:off + hw] = h_up
    padf_ref[cout:c2, off:off + hw] = low_p

    mask_l = rowdat_ref[2:3, :]           # (1, hw): 1.0 where x-1 >= 0
    mask_r = rowdat_ref[3:4, :]           # (1, hw): 1.0 where x+1 <= w-1

    flow = jnp.zeros((2, hw), jnp.float32)
    for k in range(9):
        dy = k // 3 - 1
        dx = k % 3 - 1
        start = off + dy * w + dx
        chunk = padf_ref[:, start:start + hw]                                  # (c2, hw)
        tap = jnp.dot(wf_ref[k], chunk, preferred_element_type=jnp.float32)    # (2, hw)
        if dx == -1:
            tap = tap * mask_l
        elif dx == 1:
            tap = tap * mask_r
        flow = flow + tap

    # --- flow warp: grid_sample(h_feature_orign, grid + flow/norm), zeros padding ---
    ix = rowdat_ref[0:1, :] + flow[0:1, :] * ((wh_sz - 1) / (2.0 * w))         # (1, hw)
    iy = rowdat_ref[1:2, :] + flow[1:2, :] * ((hh - 1) / (2.0 * h))            # (1, hw)

    yq = colq_ref[:, 0:1]                 # (qn, 1) static source-pixel row coords
    xq = colq_ref[:, 1:2]                 # (qn, 1) static source-pixel col coords
    # bilinear "tent" weights; out-of-range taps naturally vanish (zeros padding)
    ax = jnp.maximum(0.0, 1.0 - jnp.abs(xq - ix))                              # (qn, hw)
    ay = jnp.maximum(0.0, 1.0 - jnp.abs(yq - iy))                              # (qn, hw)

    out_ref[0] = jnp.dot(hfe_t, ax * ay, preferred_element_type=jnp.float32)   # (cin, hw)


def aligned_module_forward(low_nchw, hfe_nchw, w_down_l, w_down_h, w_flow):
    """AlignedModule.forward((low_feature, h_feature)) -> warped h_feature (NCHW)."""
    n, cin, h, w = low_nchw.shape
    hh, wh_sz = int(hfe_nchw.shape[2]), int(hfe_nchw.shape[3])
    cout = int(w_down_l.shape[0])
    hw = h * w
    qn = hh * wh_sz
    off = ((w + 1 + 127) // 128) * 128
    padlen = off + ((hw + w + 1 + 127) // 128) * 128
    f32 = jnp.float32

    # glue: NCHW -> channels-first flattened slabs (pure reshapes, no transposes)
    low_t = low_nchw.reshape(n, cin, hw).astype(f32)
    hfe_t = hfe_nchw.reshape(n, cin, qn).astype(f32)
    wl = w_down_l[:, :, 0, 0].astype(f32)                       # (cout, cin)
    whm = w_down_h[:, :, 0, 0].astype(f32)                      # (cout, cin)
    wf = jnp.transpose(w_flow, (2, 3, 0, 1)).reshape(9, 2, 2 * cout).astype(f32)

    # static per-output-pixel coordinate rows / dx masks (x varies fastest: p = y*w + x)
    ow = jnp.tile(jnp.arange(w, dtype=f32), (h,))               # (hw,)
    oh = jnp.repeat(jnp.arange(h, dtype=f32), w)                # (hw,)
    base_ix = ow * ((wh_sz - 1) / max(w - 1, 1))                # align_corners src x
    base_iy = oh * ((hh - 1) / max(h - 1, 1))                   # align_corners src y
    mask_l = (ow >= 1.0).astype(f32)
    mask_r = (ow <= float(w - 2)).astype(f32)
    rowdat = jnp.stack([base_ix, base_iy, mask_l, mask_r], axis=0)   # (4, hw)

    # static per-source-pixel coordinates (shared by upsample + warp constructions)
    qy = jnp.repeat(jnp.arange(hh, dtype=f32), wh_sz)           # (qn,)
    qx = jnp.tile(jnp.arange(wh_sz, dtype=f32), (hh,))          # (qn,)
    colq = jnp.stack([qy, qx], axis=1)                          # (qn, 2)

    # static bilinear-upsample matrix (align_corners=True), transposed: (qn, hw)
    up_t = (jnp.maximum(0.0, 1.0 - jnp.abs(qx[:, None] - base_ix[None, :])) *
            jnp.maximum(0.0, 1.0 - jnp.abs(qy[:, None] - base_iy[None, :])))

    kernel = functools.partial(aligned_kernel, h=h, w=w, hh=hh, wh_sz=wh_sz,
                               cout=cout, off=off)

    out_t = pl.pallas_call(
        kernel,
        out_shape=jax.ShapeDtypeStruct((n, cin, hw), f32),
        grid_spec=pltpu.PrefetchScalarGridSpec(
            num_scalar_prefetch=0,
            grid=(n,),
            in_specs=[
                pl.BlockSpec((1, cin, hw), lambda b: (b, 0, 0)),
                pl.BlockSpec((1, cin, qn), lambda b: (b, 0, 0)),
                pl.BlockSpec((cout, cin), lambda b: (0, 0)),
                pl.BlockSpec((cout, cin), lambda b: (0, 0)),
                pl.BlockSpec((9, 2, 2 * cout), lambda b: (0, 0, 0)),
                pl.BlockSpec((qn, hw), lambda b: (0, 0)),
                pl.BlockSpec((qn, 2), lambda b: (0, 0)),
                pl.BlockSpec((4, hw), lambda b: (0, 0)),
            ],
            out_specs=pl.BlockSpec((1, cin, hw), lambda b: (b, 0, 0)),
            scratch_shapes=[pltpu.VMEM((2 * cout, padlen), f32)],
        ),
        compiler_params=pltpu.CompilerParams(
            dimension_semantics=("parallel",),
            vmem_limit_bytes=64 * 1024 * 1024),
    )(low_t, hfe_t, wl, whm, wf, up_t, colq, rowdat)

    return out_t.reshape(n, cin, h, w)


def reference_forward(low, hfe, w_down_l, w_down_h, w_flow):
    """Pure-JAX gather-based reference mirroring the PyTorch semantics (NCHW)."""
    n, cin, h, w = low.shape
    hh, wh_sz = hfe.shape[2], hfe.shape[3]

    low_p = jnp.einsum('nchw,oc->nohw', low, w_down_l[:, :, 0, 0])
    h_p = jnp.einsum('nchw,oc->nohw', hfe, w_down_h[:, :, 0, 0])

    # bilinear upsample, align_corners=True
    iy = jnp.arange(h) * (hh - 1) / (h - 1)
    ix = jnp.arange(w) * (wh_sz - 1) / (w - 1)
    y0 = jnp.floor(iy).astype(jnp.int32); y1 = jnp.minimum(y0 + 1, hh - 1)
    x0 = jnp.floor(ix).astype(jnp.int32); x1 = jnp.minimum(x0 + 1, wh_sz - 1)
    wy1 = (iy - y0)[None, None, :, None]; wy0 = 1.0 - wy1
    wx1 = (ix - x0)[None, None, None, :]; wx0 = 1.0 - wx1
    ay = h_p[:, :, y0, :] * wy0 + h_p[:, :, y1, :] * wy1
    h_up = ay[:, :, :, x0] * wx0 + ay[:, :, :, x1] * wx1

    feat = jnp.concatenate([h_up, low_p], axis=1)
    featp = jnp.pad(feat, ((0, 0), (0, 0), (1, 1), (1, 1)))
    flow = jnp.zeros((n, 2, h, w), jnp.float32)
    for dy in range(3):
        for dx in range(3):
            flow = flow + jnp.einsum('nchw,oc->nohw',
                                     featp[:, :, dy:dy + h, dx:dx + w],
                                     w_flow[:, :, dy, dx])

    gx = jnp.linspace(-1.0, 1.0, w)[None, None, :] + flow[:, 0] / w
    gy = jnp.linspace(-1.0, 1.0, h)[None, :, None] + flow[:, 1] / h
    sx = (gx + 1.0) * 0.5 * (wh_sz - 1)
    sy = (gy + 1.0) * 0.5 * (hh - 1)
    x0 = jnp.floor(sx).astype(jnp.int32); x1 = x0 + 1
    y0 = jnp.floor(sy).astype(jnp.int32); y1 = y0 + 1
    wx1 = sx - x0; wx0 = 1.0 - wx1
    wy1 = sy - y0; wy0 = 1.0 - wy1
    n_idx = jnp.arange(n)[:, None, None]

    def gather(yy, xx):
        valid = (yy >= 0) & (yy < hh) & (xx >= 0) & (xx < wh_sz)
        yc = jnp.clip(yy, 0, hh - 1)
        xc = jnp.clip(xx, 0, wh_sz - 1)
        v = hfe[n_idx, :, yc, xc]                       # (n, h, w, cin)
        return jnp.where(valid[..., None], v, 0.0)

    out = (gather(y0, x0) * (wy0 * wx0)[..., None]
           + gather(y0, x1) * (wy0 * wx1)[..., None]
           + gather(y1, x0) * (wy1 * wx0)[..., None]
           + gather(y1, x1) * (wy1 * wx1)[..., None])
    return jnp.transpose(out, (0, 3, 1, 2))


if __name__ == "__main__":
    key = jax.random.PRNGKey(0)
    k1, k2, k3, k4, k5 = jax.random.split(key, 5)

    n = 2
    inplane, outplane = 4, 6
    h, w = 16, 16          # low_feature spatial size (also output size)
    hh, wh_sz = 8, 8       # h_feature spatial size

    low = jax.random.normal(k1, (n, inplane, h, w), jnp.float32)
    hfe = jax.random.normal(k2, (n, inplane, hh, wh_sz), jnp.float32)

    # deterministic synthetic parameters (PyTorch conv weight layouts)
    w_down_h = jax.random.normal(k3, (outplane, inplane, 1, 1), jnp.float32) / math.sqrt(inplane)
    w_down_l = jax.random.normal(k4, (outplane, inplane, 1, 1), jnp.float32) / math.sqrt(inplane)
    w_flow = jax.random.normal(k5, (2, 2 * outplane, 3, 3), jnp.float32) / math.sqrt(2 * outplane * 9)

    out = aligned_module_forward(low, hfe, w_down_l, w_down_h, w_flow)
    out = jax.block_until_ready(out)
    assert out.shape == (n, inplane, h, w)

    ref = reference_forward(low, hfe, w_down_l, w_down_h, w_flow)
    import numpy as np
    np.testing.assert_allclose(np.asarray(out), np.asarray(ref), atol=1e-3, rtol=1e-3)

    print("KERNEL_OK")
</pallas_src>

<mosaic_0001>
module attributes {stable_mosaic.version = 11 : i64} {
  func.func @aligned_kernel(%arg0: i32, %arg1: memref<1x4x256xf32, #tpu.memory_space<vmem>>, %arg2: memref<1x4x64xf32, #tpu.memory_space<vmem>>, %arg3: memref<6x4xf32, #tpu.memory_space<vmem>>, %arg4: memref<6x4xf32, #tpu.memory_space<vmem>>, %arg5: memref<9x2x12xf32, #tpu.memory_space<vmem>>, %arg6: memref<64x256xf32, #tpu.memory_space<vmem>>, %arg7: memref<64x2xf32, #tpu.memory_space<vmem>>, %arg8: memref<4x256xf32, #tpu.memory_space<vmem>>, %arg9: memref<1x4x256xf32, #tpu.memory_space<vmem>>, %arg10: memref<12x512xf32, #tpu.memory_space<vmem>>) attributes {dimension_semantics = [#tpu.dimension_semantics<parallel>], iteration_bounds = array<i64: 2>, scalar_prefetch = 0 : i64, scratch_operands = 1 : i64, tpu.core_type = #tpu.core_type<tc>, window_params = [{transform_indices = @transform_0, window_bounds = array<i64: 1, 4, 256>}, {transform_indices = @transform_1, window_bounds = array<i64: 1, 4, 64>}, {pipeline_mode = #tpu.pipeline_mode<synchronous>, transform_indices = @transform_2, window_bounds = array<i64: 6, 4>}, {pipeline_mode = #tpu.pipeline_mode<synchronous>, transform_indices = @transform_3, window_bounds = array<i64: 6, 4>}, {pipeline_mode = #tpu.pipeline_mode<synchronous>, transform_indices = @transform_4, window_bounds = array<i64: 9, 2, 12>}, {pipeline_mode = #tpu.pipeline_mode<synchronous>, transform_indices = @transform_5, window_bounds = array<i64: 64, 256>}, {pipeline_mode = #tpu.pipeline_mode<synchronous>, transform_indices = @transform_6, window_bounds = array<i64: 64, 2>}, {pipeline_mode = #tpu.pipeline_mode<synchronous>, transform_indices = @transform_7, window_bounds = array<i64: 4, 256>}, {transform_indices = @transform_8, window_bounds = array<i64: 1, 4, 256>}]} {
    %c0 = arith.constant 0 : index
    %c0_0 = arith.constant 0 : index
    %c0_1 = arith.constant 0 : index
    %0 = vector.load %arg1[%c0, %c0_0, %c0_1] : memref<1x4x256xf32, #tpu.memory_space<vmem>>, vector<1x4x256xf32>
    %1 = vector.shape_cast %0 : vector<1x4x256xf32> to vector<4x256xf32>
    %c0_2 = arith.constant 0 : index
    %c0_3 = arith.constant 0 : index
    %c0_4 = arith.constant 0 : index
    %2 = vector.load %arg2[%c0_2, %c0_3, %c0_4] : memref<1x4x64xf32, #tpu.memory_space<vmem>>, vector<1x4x64xf32>
    %3 = vector.shape_cast %2 : vector<1x4x64xf32> to vector<4x64xf32>
    %c0_5 = arith.constant 0 : index
    %c0_6 = arith.constant 0 : index
    %4 = vector.load %arg3[%c0_5, %c0_6] : memref<6x4xf32, #tpu.memory_space<vmem>>, vector<6x4xf32>
    %cst = arith.constant dense<0.000000e+00> : vector<6x256xf32>
    %5 = tpu.matmul %4, %1, %cst {dimension_numbers = #tpu.dot_dimension_numbers<[1], [0], [0], [1], [0, 0, 1, 1], [], []>} : vector<6x4xf32>, vector<4x256xf32>, vector<6x256xf32> -> vector<6x256xf32>
    %c0_7 = arith.constant 0 : index
    %c0_8 = arith.constant 0 : index
    %6 = vector.load %arg4[%c0_7, %c0_8] : memref<6x4xf32, #tpu.memory_space<vmem>>, vector<6x4xf32>
    %cst_9 = arith.constant dense<0.000000e+00> : vector<6x64xf32>
    %7 = tpu.matmul %6, %3, %cst_9 {dimension_numbers = #tpu.dot_dimension_numbers<[1], [0], [0], [1], [0, 0, 1, 1], [], []>} : vector<6x4xf32>, vector<4x64xf32>, vector<6x64xf32> -> vector<6x64xf32>
    %c0_10 = arith.constant 0 : index
    %c0_11 = arith.constant 0 : index
    %8 = vector.load %arg6[%c0_10, %c0_11] : memref<64x256xf32, #tpu.memory_space<vmem>>, vector<64x256xf32>
    %cst_12 = arith.constant dense<0.000000e+00> : vector<6x256xf32>
    %9 = tpu.matmul %7, %8, %cst_12 {dimension_numbers = #tpu.dot_dimension_numbers<[1], [0], [0], [1], [0, 0, 1, 1], [], []>} : vector<6x64xf32>, vector<64x256xf32>, vector<6x256xf32> -> vector<6x256xf32>
    %cst_13 = arith.constant 0.000000e+00 : f32
    %10 = vector.broadcast %cst_13 : f32 to vector<12x17xf32>
    %c0_14 = arith.constant 0 : index
    %c111 = arith.constant 111 : index
    %11 = vector.load %arg10[%c0_14, %c111] : memref<12x512xf32, #tpu.memory_space<vmem>>, vector<12x17xf32>
    tpu.vector_store %arg10[%c0_14, %c111], %10 {strides = array<i32>} : memref<12x512xf32, #tpu.memory_space<vmem>>, vector<12x17xf32>,
    %cst_15 = arith.constant 0.000000e+00 : f32
    %12 = vector.broadcast %cst_15 : f32 to vector<12x17xf32>
    %c0_16 = arith.constant 0 : index
    %c384 = arith.constant 384 : index
    %13 = vector.load %arg10[%c0_16, %c384] : memref<12x512xf32, #tpu.memory_space<vmem>>, vector<12x17xf32>
    tpu.vector_store %arg10[%c0_16, %c384], %12 {strides = array<i32>} : memref<12x512xf32, #tpu.memory_space<vmem>>, vector<12x17xf32>,
    %c0_17 = arith.constant 0 : index
    %c128 = arith.constant 128 : index
    %14 = vector.load %arg10[%c0_17, %c128] : memref<12x512xf32, #tpu.memory_space<vmem>>, vector<6x256xf32>
    tpu.vector_store %arg10[%c0_17, %c128], %9 {strides = array<i32>} : memref<12x512xf32, #tpu.memory_space<vmem>>, vector<6x256xf32>,
    %c6 = arith.constant 6 : index
    %c128_18 = arith.constant 128 : index
    %15 = vector.load %arg10[%c6, %c128_18] : memref<12x512xf32, #tpu.memory_space<vmem>>, vector<6x256xf32>
    tpu.vector_store %arg10[%c6, %c128_18], %5 {strides = array<i32>} : memref<12x512xf32, #tpu.memory_space<vmem>>, vector<6x256xf32>,
    %c2 = arith.constant 2 : index
    %c0_19 = arith.constant 0 : index
    %16 = vector.load %arg8[%c2, %c0_19] : memref<4x256xf32, #tpu.memory_space<vmem>>, vector<1x256xf32>
    %c3 = arith.constant 3 : index
    %c0_20 = arith.constant 0 : index
    %17 = vector.load %arg8[%c3, %c0_20] : memref<4x256xf32, #tpu.memory_space<vmem>>, vector<1x256xf32>
    %cst_21 = arith.constant 0.000000e+00 : f32
    %18 = vector.broadcast %cst_21 : f32 to vector<2x256xf32>
    %c0_22 = arith.constant 0 : index
    %c111_23 = arith.constant 111 : index
    %19 = vector.load %arg10[%c0_22, %c111_23] : memref<12x512xf32, #tpu.memory_space<vmem>>, vector<12x256xf32>
    %c0_24 = arith.constant 0 : index
    %c0_25 = arith.constant 0 : index
    %c0_26 = arith.constant 0 : index
    %20 = vector.load %arg5[%c0_24, %c0_25, %c0_26] : memref<9x2x12xf32, #tpu.memory_space<vmem>>, vector<1x2x12xf32>
    %21 = vector.shape_cast %20 : vector<1x2x12xf32> to vector<2x12xf32>
    %cst_27 = arith.constant dense<0.000000e+00> : vector<2x256xf32>
    %22 = tpu.matmul %21, %19, %cst_27 {dimension_numbers = #tpu.dot_dimension_numbers<[1], [0], [0], [1], [0, 0, 1, 1], [], []>} : vector<2x12xf32>, vector<12x256xf32>, vector<2x256xf32> -> vector<2x256xf32>
    %23 = vector.broadcast %16 : vector<1x256xf32> to vector<2x256xf32>
    %24 = arith.mulf %22, %23 : vector<2x256xf32>
    %25 = arith.addf %18, %24 : vector<2x256xf32>
    %c0_28 = arith.constant 0 : index
    %c112 = arith.constant 112 : index
    %26 = vector.load %arg10[%c0_28, %c112] : memref<12x512xf32, #tpu.memory_space<vmem>>, vector<12x256xf32>
    %c1 = arith.constant 1 : index
    %c0_29 = arith.constant 0 : index
    %c0_30 = arith.constant 0 : index
    %27 = vector.load %arg5[%c1, %c0_29, %c0_30] : memref<9x2x12xf32, #tpu.memory_space<vmem>>, vector<1x2x12xf32>
    %28 = vector.shape_cast %27 : vector<1x2x12xf32> to vector<2x12xf32>
    %cst_31 = arith.constant dense<0.000000e+00> : vector<2x256xf32>
    %29 = tpu.matmul %28, %26, %cst_31 {dimension_numbers = #tpu.dot_dimension_numbers<[1], [0], [0], [1], [0, 0, 1, 1], [], []>} : vector<2x12xf32>, vector<12x256xf32>, vector<2x256xf32> -> vector<2x256xf32>
    %30 = arith.addf %25, %29 : vector<2x256xf32>
    %c0_32 = arith.constant 0 : index
    %c113 = arith.constant 113 : index
    %31 = vector.load %arg10[%c0_32, %c113] : memref<12x512xf32, #tpu.memory_space<vmem>>, vector<12x256xf32>
    %c2_33 = arith.constant 2 : index
    %c0_34 = arith.constant 0 : index
    %c0_35 = arith.constant 0 : index
    %32 = vector.load %arg5[%c2_33, %c0_34, %c0_35] : memref<9x2x12xf32, #tpu.memory_space<vmem>>, vector<1x2x12xf32>
    %33 = vector.shape_cast %32 : vector<1x2x12xf32> to vector<2x12xf32>
    %cst_36 = arith.constant dense<0.000000e+00> : vector<2x256xf32>
    %34 = tpu.matmul %33, %31, %cst_36 {dimension_numbers = #tpu.dot_dimension_numbers<[1], [0], [0], [1], [0, 0, 1, 1], [], []>} : vector<2x12xf32>, vector<12x256xf32>, vector<2x256xf32> -> vector<2x256xf32>
    %35 = vector.broadcast %17 : vector<1x256xf32> to vector<2x256xf32>
    %36 = arith.mulf %34, %35 : vector<2x256xf32>
    %37 = arith.addf %30, %36 : vector<2x256xf32>
    %c0_37 = arith.constant 0 : index
    %c127 = arith.constant 127 : index
    %38 = vector.load %arg10[%c0_37, %c127] : memref<12x512xf32, #tpu.memory_space<vmem>>, vector<12x256xf32>
    %c3_38 = arith.constant 3 : index
    %c0_39 = arith.constant 0 : index
    %c0_40 = arith.constant 0 : index
    %39 = vector.load %arg5[%c3_38, %c0_39, %c0_40] : memref<9x2x12xf32, #tpu.memory_space<vmem>>, vector<1x2x12xf32>
    %40 = vector.shape_cast %39 : vector<1x2x12xf32> to vector<2x12xf32>
    %cst_41 = arith.constant dense<0.000000e+00> : vector<2x256xf32>
    %41 = tpu.matmul %40, %38, %cst_41 {dimension_numbers = #tpu.dot_dimension_numbers<[1], [0], [0], [1], [0, 0, 1, 1], [], []>} : vector<2x12xf32>, vector<12x256xf32>, vector<2x256xf32> -> vector<2x256xf32>
    %42 = vector.broadcast %16 : vector<1x256xf32> to vector<2x256xf32>
    %43 = arith.mulf %41, %42 : vector<2x256xf32>
    %44 = arith.addf %37, %43 : vector<2x256xf32>
    %c0_42 = arith.constant 0 : index
    %c128_43 = arith.constant 128 : index
    %45 = vector.load %arg10[%c0_42, %c128_43] : memref<12x512xf32, #tpu.memory_space<vmem>>, vector<12x256xf32>
    %c4 = arith.constant 4 : index
    %c0_44 = arith.constant 0 : index
    %c0_45 = arith.constant 0 : index
    %46 = vector.load %arg5[%c4, %c0_44, %c0_45] : memref<9x2x12xf32, #tpu.memory_space<vmem>>, vector<1x2x12xf32>
    %47 = vector.shape_cast %46 : vector<1x2x12xf32> to vector<2x12xf32>
    %cst_46 = arith.constant dense<0.000000e+00> : vector<2x256xf32>
    %48 = tpu.matmul %47, %45, %cst_46 {dimension_numbers = #tpu.dot_dimension_numbers<[1], [0], [0], [1], [0, 0, 1, 1], [], []>} : vector<2x12xf32>, vector<12x256xf32>, vector<2x256xf32> -> vector<2x256xf32>
    %49 = arith.addf %44, %48 : vector<2x256xf32>
    %c0_47 = arith.constant 0 : index
    %c129 = arith.constant 129 : index
    %50 = vector.load %arg10[%c0_47, %c129] : memref<12x512xf32, #tpu.memory_space<vmem>>, vector<12x256xf32>
    %c5 = arith.constant 5 : index
    %c0_48 = arith.constant 0 : index
    %c0_49 = arith.constant 0 : index
    %51 = vector.load %arg5[%c5, %c0_48, %c0_49] : memref<9x2x12xf32, #tpu.memory_space<vmem>>, vector<1x2x12xf32>
    %52 = vector.shape_cast %51 : vector<1x2x12xf32> to vector<2x12xf32>
    %cst_50 = arith.constant dense<0.000000e+00> : vector<2x256xf32>
    %53 = tpu.matmul %52, %50, %cst_50 {dimension_numbers = #tpu.dot_dimension_numbers<[1], [0], [0], [1], [0, 0, 1, 1], [], []>} : vector<2x12xf32>, vector<12x256xf32>, vector<2x256xf32> -> vector<2x256xf32>
    %54 = vector.broadcast %17 : vector<1x256xf32> to vector<2x256xf32>
    %55 = arith.mulf %53, %54 : vector<2x256xf32>
    %56 = arith.addf %49, %55 : vector<2x256xf32>
    %c0_51 = arith.constant 0 : index
    %c143 = arith.constant 143 : index
    %57 = vector.load %arg10[%c0_51, %c143] : memref<12x512xf32, #tpu.memory_space<vmem>>, vector<12x256xf32>
    %c6_52 = arith.constant 6 : index
    %c0_53 = arith.constant 0 : index
    %c0_54 = arith.constant 0 : index
    %58 = vector.load %arg5[%c6_52, %c0_53, %c0_54] : memref<9x2x12xf32, #tpu.memory_space<vmem>>, vector<1x2x12xf32>
    %59 = vector.shape_cast %58 : vector<1x2x12xf32> to vector<2x12xf32>
    %cst_55 = arith.constant dense<0.000000e+00> : vector<2x256xf32>
    %60 = tpu.matmul %59, %57, %cst_55 {dimension_numbers = #tpu.dot_dimension_numbers<[1], [0], [0], [1], [0, 0, 1, 1], [], []>} : vector<2x12xf32>, vector<12x256xf32>, vector<2x256xf32> -> vector<2x256xf32>
    %61 = vector.broadcast %16 : vector<1x256xf32> to vector<2x256xf32>
    %62 = arith.mulf %60, %61 : vector<2x256xf32>
    %63 = arith.addf %56, %62 : vector<2x256xf32>
    %c0_56 = arith.constant 0 : index
    %c144 = arith.constant 144 : index
    %64 = vector.load %arg10[%c0_56, %c144] : memref<12x512xf32, #tpu.memory_space<vmem>>, vector<12x256xf32>
    %c7 = arith.constant 7 : index
    %c0_57 = arith.constant 0 : index
    %c0_58 = arith.constant 0 : index
    %65 = vector.load %arg5[%c7, %c0_57, %c0_58] : memref<9x2x12xf32, #tpu.memory_space<vmem>>, vector<1x2x12xf32>
    %66 = vector.shape_cast %65 : vector<1x2x12xf32> to vector<2x12xf32>
    %cst_59 = arith.constant dense<0.000000e+00> : vector<2x256xf32>
    %67 = tpu.matmul %66, %64, %cst_59 {dimension_numbers = #tpu.dot_dimension_numbers<[1], [0], [0], [1], [0, 0, 1, 1], [], []>} : vector<2x12xf32>, vector<12x256xf32>, vector<2x256xf32> -> vector<2x256xf32>
    %68 = arith.addf %63, %67 : vector<2x256xf32>
    %c0_60 = arith.constant 0 : index
    %c145 = arith.constant 145 : index
    %69 = vector.load %arg10[%c0_60, %c145] : memref<12x512xf32, #tpu.memory_space<vmem>>, vector<12x256xf32>
    %c8 = arith.constant 8 : index
    %c0_61 = arith.constant 0 : index
    %c0_62 = arith.constant 0 : index
    %70 = vector.load %arg5[%c8, %c0_61, %c0_62] : memref<9x2x12xf32, #tpu.memory_space<vmem>>, vector<1x2x12xf32>
    %71 = vector.shape_cast %70 : vector<1x2x12xf32> to vector<2x12xf32>
    %cst_63 = arith.constant dense<0.000000e+00> : vector<2x256xf32>
    %72 = tpu.matmul %71, %69, %cst_63 {dimension_numbers = #tpu.dot_dimension_numbers<[1], [0], [0], [1], [0, 0, 1, 1], [], []>} : vector<2x12xf32>, vector<12x256xf32>, vector<2x256xf32> -> vector<2x256xf32>
    %73 = vector.broadcast %17 : vector<1x256xf32> to vector<2x256xf32>
    %74 = arith.mulf %72, %73 : vector<2x256xf32>
    %75 = arith.addf %68, %74 : vector<2x256xf32>
    %c0_64 = arith.constant 0 : index
    %c0_65 = arith.constant 0 : index
    %76 = vector.load %arg8[%c0_64, %c0_65] : memref<4x256xf32, #tpu.memory_space<vmem>>, vector<1x256xf32>
    %77 = vector.extract_strided_slice %75 {offsets = [0, 0], sizes = [1, 256], strides = [1, 1]} : vector<2x256xf32> to vector<1x256xf32>
    %cst_66 = arith.constant 2.187500e-01 : f32
    %78 = vector.broadcast %cst_66 : f32 to vector<1x256xf32>
    %79 = arith.mulf %77, %78 : vector<1x256xf32>
    %80 = arith.addf %76, %79 : vector<1x256xf32>
    %c1_67 = arith.constant 1 : index
    %c0_68 = arith.constant 0 : index
    %81 = vector.load %arg8[%c1_67, %c0_68] : memref<4x256xf32, #tpu.memory_space<vmem>>, vector<1x256xf32>
    %82 = vector.extract_strided_slice %75 {offsets = [1, 0], sizes = [1, 256], strides = [1, 1]} : vector<2x256xf32> to vector<1x256xf32>
    %cst_69 = arith.constant 2.187500e-01 : f32
    %83 = vector.broadcast %cst_69 : f32 to vector<1x256xf32>
    %84 = arith.mulf %82, %83 : vector<1x256xf32>
    %85 = arith.addf %81, %84 : vector<1x256xf32>
    %c0_70 = arith.constant 0 : index
    %c0_71 = arith.constant 0 : index
    %86 = vector.load %arg7[%c0_70, %c0_71] : memref<64x2xf32, #tpu.memory_space<vmem>>, vector<64x1xf32>
    %c0_72 = arith.constant 0 : index
    %c1_73 = arith.constant 1 : index
    %87 = vector.load %arg7[%c0_72, %c1_73] : memref<64x2xf32, #tpu.memory_space<vmem>>, vector<64x1xf32>
    %88 = vector.broadcast %87 : vector<64x1xf32> to vector<64x256xf32>
    %89 = vector.broadcast %80 : vector<1x256xf32> to vector<64x256xf32>
    %90 = arith.subf %88, %89 : vector<64x256xf32>
    %91 = math.absf %90 : vector<64x256xf32>
    %cst_74 = arith.constant 1.000000e+00 : f32
    %92 = vector.broadcast %cst_74 : f32 to vector<64x256xf32>
    %93 = arith.subf %92, %91 : vector<64x256xf32>
    %cst_75 = arith.constant 0.000000e+00 : f32
    %94 = vector.broadcast %cst_75 : f32 to vector<64x256xf32>
    %95 = arith.maximumf %94, %93 : vector<64x256xf32>
    %96 = vector.broadcast %86 : vector<64x1xf32> to vector<64x256xf32>
    %97 = vector.broadcast %85 : vector<1x256xf32> to vector<64x256xf32>
    %98 = arith.subf %96, %97 : vector<64x256xf32>
    %99 = math.absf %98 : vector<64x256xf32>
    %cst_76 = arith.constant 1.000000e+00 : f32
    %100 = vector.broadcast %cst_76 : f32 to vector<64x256xf32>
    %101 = arith.subf %100, %99 : vector<64x256xf32>
    %cst_77 = arith.constant 0.000000e+00 : f32
    %102 = vector.broadcast %cst_77 : f32 to vector<64x256xf32>
    %103 = arith.maximumf %102, %101 : vector<64x256xf32>
    %104 = arith.mulf %95, %103 : vector<64x256xf32>
    %cst_78 = arith.constant dense<0.000000e+00> : vector<4x256xf32>
    %105 = tpu.matmul %3, %104, %cst_78 {dimension_numbers = #tpu.dot_dimension_numbers<[1], [0], [0], [1], [0, 0, 1, 1], [], []>} : vector<4x64xf32>, vector<64x256xf32>, vector<4x256xf32> -> vector<4x256xf32>
    %c0_79 = arith.constant 0 : index
    %c0_80 = arith.constant 0 : index
    %c0_81 = arith.constant 0 : index
    %106 = vector.load %arg9[%c0_79, %c0_80, %c0_81] : memref<1x4x256xf32, #tpu.memory_space<vmem>>, vector<1x4x256xf32>
    %107 = vector.shape_cast %106 : vector<1x4x256xf32> to vector<4x256xf32>
    %108 = vector.shape_cast %105 : vector<4x256xf32> to vector<1x4x256xf32>
    tpu.vector_store %arg9[%c0_79, %c0_80, %c0_81], %108 {strides = array<i32>} : memref<1x4x256xf32, #tpu.memory_space<vmem>>, vector<1x4x256xf32>,
    return
  }
  func.func @transform_0(%arg0: i32) -> (i32, i32, i32) {
    %c0_i32 = arith.constant 0 : i32
    %c0_i32_0 = arith.constant 0 : i32
    %c0_i32_1 = arith.constant 0 : i32
    return %arg0, %c0_i32, %c0_i32_0 : i32, i32, i32
  }
  func.func @transform_1(%arg0: i32) -> (i32, i32, i32) {
    %c0_i32 = arith.constant 0 : i32
    %c0_i32_0 = arith.constant 0 : i32
    %c0_i32_1 = arith.constant 0 : i32
    return %arg0, %c0_i32, %c0_i32_0 : i32, i32, i32
  }
  func.func @transform_2(%arg0: i32) -> (i32, i32) {
    %c0_i32 = arith.constant 0 : i32
    %c0_i32_0 = arith.constant 0 : i32
    %c0_i32_1 = arith.constant 0 : i32
    return %c0_i32, %c0_i32_0 : i32, i32
  }
  func.func @transform_3(%arg0: i32) -> (i32, i32) {
    %c0_i32 = arith.constant 0 : i32
    %c0_i32_0 = arith.constant 0 : i32
    %c0_i32_1 = arith.constant 0 : i32
    return %c0_i32, %c0_i32_0 : i32, i32
  }
  func.func @transform_4(%arg0: i32) -> (i32, i32, i32) {
    %c0_i32 = arith.constant 0 : i32
    %c0_i32_0 = arith.constant 0 : i32
    %c0_i32_1 = arith.constant 0 : i32
    %c0_i32_2 = arith.constant 0 : i32
    return %c0_i32, %c0_i32_0, %c0_i32_1 : i32, i32, i32
  }
  func.func @transform_5(%arg0: i32) -> (i32, i32) {
    %c0_i32 = arith.constant 0 : i32
    %c0_i32_0 = arith.constant 0 : i32
    %c0_i32_1 = arith.constant 0 : i32
    return %c0_i32, %c0_i32_0 : i32, i32
  }
  func.func @transform_6(%arg0: i32) -> (i32, i32) {
    %c0_i32 = arith.constant 0 : i32
    %c0_i32_0 = arith.constant 0 : i32
    %c0_i32_1 = arith.constant 0 : i32
    return %c0_i32, %c0_i32_0 : i32, i32
  }
  func.func @transform_7(%arg0: i32) -> (i32, i32) {
    %c0_i32 = arith.constant 0 : i32
    %c0_i32_0 = arith.constant 0 : i32
    %c0_i32_1 = arith.constant 0 : i32
    return %c0_i32, %c0_i32_0 : i32, i32
  }
  func.func @transform_8(%arg0: i32) -> (i32, i32, i32) {
    %c0_i32 = arith.constant 0 : i32
    %c0_i32_0 = arith.constant 0 : i32
    %c0_i32_1 = arith.constant 0 : i32
    return %arg0, %c0_i32, %c0_i32_0 : i32, i32, i32
  }
}

</mosaic_0001>

<llo_original>
// kernel: tpu_custom_call.1
$region0: #{tpu_custom_call.1}
  #allocation0 [shape = 'u32[]', space=smem, size = 0x4, offset = 0x4, fixed_abs, tag = 'smem constant byte address 0x4 - core index']
  #allocation1 [shape = 'u32[72,128]{1,0:T(1,128)}', space=vmem, size = 0x9000, scoped, tag = 'internal scratch']
  #allocation2 [shape = 'f32[12,512]{1,0:T(8,128)}', space=vmem, size = 0x8000, scoped, tag = 'scratch operand']
  %s0 = inlined_call_operand.vmem [shape: f32[2,4,256], index: 0, kind: input, shape index: {}]
  %s1 = inlined_call_operand.vmem [shape: f32[2,4,64], index: 1, kind: input, shape index: {}]
  %s2 = inlined_call_operand.vmem [shape: f32[6,4], index: 2, kind: input, shape index: {}]
  %s3 = inlined_call_operand.vmem [shape: f32[6,4], index: 3, kind: input, shape index: {}]
  %s4 = inlined_call_operand.vmem [shape: f32[9,2,12], index: 4, kind: input, shape index: {}]
  %s5 = inlined_call_operand.hbm [shape: f32[64,256], index: 5, kind: input, shape index: {}]
  %s6 = inlined_call_operand.vmem [shape: f32[64,2], index: 6, kind: input, shape index: {}]
  %s7 = inlined_call_operand.vmem [shape: f32[4,256], index: 7, kind: input, shape index: {}]
  %s8 = inlined_call_operand.hbm [shape: f32[2,4,256], index: 8, kind: output, shape index: {}]
  %s9 = sld [smem:[#allocation0]]
  $region69: #{tpu_custom_call.1} parent=0
    _
  %s11 = ssub.s32 1, %s9
  %s12 = scalar_select 0, %s11, %s9
  $region1: #{tpu_custom_call.1} parent=0
    #allocation3 [shape = 'u8[65536]{0}', space=vmem, size = 0x10000, scoped, tag = 'input window, operand 5, single buffered']
    #allocation4 [shape = 's32[2]{0}', space=sflag, size = 0x8, scoped, tag = 'scoped memory for tpu_custom_call.1']
    #allocation5 [shape = 's32[2]{0}', space=sflag, size = 0x8, scoped, tag = 'scoped memory for tpu_custom_call.1']
    #allocation6 [shape = 'u8[8192]{0}', space=vmem, size = 0x2000, scoped, tag = 'output window, operand 0']
    %13 = vsyncpa [#allocation4], 0
    %14 = vsyncpa [#allocation5], 0
    %s15 = scalar_lea.sflag [#allocation5], 1
    %16 = vsyncpa %s15, 0
    loop: start=0, step=1, limit=4
    $region2: #{tpu_custom_call.1} parent=1 // loop_pre_header
      _
    $region3: #{tpu_custom_call.1} parent=1 // loop_header
      %s18 = sphi 0, %s22
      %p19 = scmp.ge.s32.totalorder %s18, 4
      %s28 = sphi 0, %s30
      %s31 = sphi 0, %s28
      %s32 = sphi 0, %s31
      %s48 = sphi 0, %s32
      %s54 = sphi 0, %s56
      %s57 = sphi 0, %s54
      %s58 = sphi 0, %s57
      %s74 = sphi 0, %s58
      %s78 = sphi 0, %s78
      %s80 = sphi 0, %s78
      %s81 = sphi 0, %s80
      %s95 = sphi 0, %s81
      %s99 = sphi 0, %s99
      %s101 = sphi 0, %s99
      %s102 = sphi 0, %s101
      %s116 = sphi 0, %s102
      %s120 = sphi 0, %s120
      %s122 = sphi 0, %s120
      %s123 = sphi 0, %s122
      %s137 = sphi 0, %s123
      %s141 = sphi 0, %s141
      %s143 = sphi 0, %s141
      %s144 = sphi 0, %s143
      %s158 = sphi 0, %s144
      %s162 = sphi 0, %s162
      %s164 = sphi 0, %s162
      %s165 = sphi 0, %s164
      %s179 = sphi 0, %s165
      %s183 = sphi 0, %s183
      %s185 = sphi 0, %s183
      %s186 = sphi 0, %s185
      %s200 = sphi 0, %s186
      %s206 = sphi 0, %s208
      %s209 = sphi 0, %s206
      %s210 = sphi 0, %s209
      %s226 = sphi 0, %s210
    $region4: #{tpu_custom_call.1} parent=1 // loop_header_branch
      %21 = sbr.rel (%p19) target = $region8
    $region5: #{tpu_custom_call.1} parent=1 // loop_body
      %s23 = ssub.s32 %s18, 1
      %s24 = ssub.s32 %s18, 2
      %s25 = sadd.s32 %s18, 1
      %s26 = ssub.s32 %s18, %s25
      %p27 = scmp.eq.s32.totalorder %s26, 0
      %s29 = sadd.s32 %s28, 1
      %s30 = scalar_select %p27, %s28, %s29
      %p33 = pneg %p27
      %p34 = scmp.eq.s32.totalorder %s18, 1
      %p35 = por %p33, %p34
      %p36 = scmp.ne.s32.totalorder %s28, %s31
      %p37 = scmp.eq.s32.totalorder %s18, 0
      %p38 = por %p36, %p37
      %p39 = scmp.ne.s32.totalorder %s28, %s31
      %p40 = scmp.eq.s32.totalorder %s23, 1
      %p41 = por %p39, %p40
      %p42 = scmp.ne.s32.totalorder %s31, %s32
      %p43 = scmp.eq.s32.totalorder %s23, 0
      %p44 = por %p42, %p43
      %p45 = scmp.ne.s32.totalorder %s31, %s32
      %p46 = scmp.eq.s32.totalorder %s24, 1
      %p47 = por %p45, %p46
      %p49 = scmp.ne.s32.totalorder %s32, %s48
      %p50 = scmp.eq.s32.totalorder %s24, 0
      %p51 = por %p49, %p50
      %s52 = ssub.s32 %s18, %s25
      %p53 = scmp.eq.s32.totalorder %s52, 0
      %s55 = sadd.s32 %s54, 1
      %s56 = scalar_select %p53, %s54, %s55
      %p59 = pneg %p53
      %p60 = scmp.eq.s32.totalorder %s18, 1
      %p61 = por %p59, %p60
      %p62 = scmp.ne.s32.totalorder %s54, %s57
      %p63 = scmp.eq.s32.totalorder %s18, 0
      %p64 = por %p62, %p63
      %p65 = scmp.ne.s32.totalorder %s54, %s57
      %p66 = scmp.eq.s32.totalorder %s23, 1
      %p67 = por %p65, %p66
      %p68 = scmp.ne.s32.totalorder %s57, %s58
      %p69 = scmp.eq.s32.totalorder %s23, 0
      %p70 = por %p68, %p69
      %p71 = scmp.ne.s32.totalorder %s57, %s58
      %p72 = scmp.eq.s32.totalorder %s24, 1
      %p73 = por %p71, %p72
      %p75 = scmp.ne.s32.totalorder %s58, %s74
      %p76 = scmp.eq.s32.totalorder %s24, 0
      %p77 = por %p75, %p76
      %s79 = sadd.s32 %s78, 1
      %p82 = scmp.eq.s32.totalorder %s18, 1
      %p83 = scmp.ne.s32.totalorder %s78, %s80
      %p84 = scmp.eq.s32.totalorder %s18, 0
      %p85 = por %p83, %p84
      %p86 = scmp.ne.s32.totalorder %s78, %s80
      %p87 = scmp.eq.s32.totalorder %s23, 1
      %p88 = por %p86, %p87
      %p89 = scmp.ne.s32.totalorder %s80, %s81
      %p90 = scmp.eq.s32.totalorder %s23, 0
      %p91 = por %p89, %p90
      %p92 = scmp.ne.s32.totalorder %s80, %s81
      %p93 = scmp.eq.s32.totalorder %s24, 1
      %p94 = por %p92, %p93
      %p96 = scmp.ne.s32.totalorder %s81, %s95
      %p97 = scmp.eq.s32.totalorder %s24, 0
      %p98 = por %p96, %p97
      %s100 = sadd.s32 %s99, 1
      %p103 = scmp.eq.s32.totalorder %s18, 1
      %p104 = scmp.ne.s32.totalorder %s99, %s101
      %p105 = scmp.eq.s32.totalorder %s18, 0
      %p106 = por %p104, %p105
      %p107 = scmp.ne.s32.totalorder %s99, %s101
      %p108 = scmp.eq.s32.totalorder %s23, 1
      %p109 = por %p107, %p108
      %p110 = scmp.ne.s32.totalorder %s101, %s102
      %p111 = scmp.eq.s32.totalorder %s23, 0
      %p112 = por %p110, %p111
      %p113 = scmp.ne.s32.totalorder %s101, %s102
      %p114 = scmp.eq.s32.totalorder %s24, 1
      %p115 = por %p113, %p114
      %p117 = scmp.ne.s32.totalorder %s102, %s116
      %p118 = scmp.eq.s32.totalorder %s24, 0
      %p119 = por %p117, %p118
      %s121 = sadd.s32 %s120, 1
      %p124 = scmp.eq.s32.totalorder %s18, 1
      %p125 = scmp.ne.s32.totalorder %s120, %s122
      %p126 = scmp.eq.s32.totalorder %s18, 0
      %p127 = por %p125, %p126
      %p128 = scmp.ne.s32.totalorder %s120, %s122
      %p129 = scmp.eq.s32.totalorder %s23, 1
      %p130 = por %p128, %p129
      %p131 = scmp.ne.s32.totalorder %s122, %s123
      %p132 = scmp.eq.s32.totalorder %s23, 0
      %p133 = por %p131, %p132
      %p134 = scmp.ne.s32.totalorder %s122, %s123
      %p135 = scmp.eq.s32.totalorder %s24, 1
      %p136 = por %p134, %p135
      %p138 = scmp.ne.s32.totalorder %s123, %s137
      %p139 = scmp.eq.s32.totalorder %s24, 0
      %p140 = por %p138, %p139
      %s142 = sadd.s32 %s141, 1
      %p145 = scmp.eq.s32.totalorder %s18, 1
      %p146 = scmp.ne.s32.totalorder %s141, %s143
      %p147 = scmp.eq.s32.totalorder %s18, 0
      %p148 = por %p146, %p147
      %p149 = scmp.ne.s32.totalorder %s141, %s143
      %p150 = scmp.eq.s32.totalorder %s23, 1
      %p151 = por %p149, %p150
      %p152 = scmp.ne.s32.totalorder %s143, %s144
      %p153 = scmp.eq.s32.totalorder %s23, 0
      %p154 = por %p152, %p153
      %p155 = scmp.ne.s32.totalorder %s143, %s144
      %p156 = scmp.eq.s32.totalorder %s24, 1
      %p157 = por %p155, %p156
      %p159 = scmp.ne.s32.totalorder %s144, %s158
      %p160 = scmp.eq.s32.totalorder %s24, 0
      %p161 = por %p159, %p160
      %s163 = sadd.s32 %s162, 1
      %p166 = scmp.eq.s32.totalorder %s18, 1
      %p167 = scmp.ne.s32.totalorder %s162, %s164
      %p168 = scmp.eq.s32.totalorder %s18, 0
      %p169 = por %p167, %p168
      %p170 = scmp.ne.s32.totalorder %s162, %s164
      %p171 = scmp.eq.s32.totalorder %s23, 1
      %p172 = por %p170, %p171
      %p173 = scmp.ne.s32.totalorder %s164, %s165
      %p174 = scmp.eq.s32.totalorder %s23, 0
      %p175 = por %p173, %p174
      %p176 = scmp.ne.s32.totalorder %s164, %s165
      %p177 = scmp.eq.s32.totalorder %s24, 1
      %p178 = por %p176, %p177
      %p180 = scmp.ne.s32.totalorder %s165, %s179
      %p181 = scmp.eq.s32.totalorder %s24, 0
      %p182 = por %p180, %p181
      %s184 = sadd.s32 %s183, 1
      %p187 = scmp.eq.s32.totalorder %s18, 1
      %p188 = scmp.ne.s32.totalorder %s183, %s185
      %p189 = scmp.eq.s32.totalorder %s18, 0
      %p190 = por %p188, %p189
      %p191 = scmp.ne.s32.totalorder %s183, %s185
      %p192 = scmp.eq.s32.totalorder %s23, 1
      %p193 = por %p191, %p192
      %p194 = scmp.ne.s32.totalorder %s185, %s186
      %p195 = scmp.eq.s32.totalorder %s23, 0
      %p196 = por %p194, %p195
      %p197 = scmp.ne.s32.totalorder %s185, %s186
      %p198 = scmp.eq.s32.totalorder %s24, 1
      %p199 = por %p197, %p198
      %p201 = scmp.ne.s32.totalorder %s186, %s200
      %p202 = scmp.eq.s32.totalorder %s24, 0
      %p203 = por %p201, %p202
      %s204 = ssub.s32 %s18, %s25
      %p205 = scmp.eq.s32.totalorder %s204, 0
      %s207 = sadd.s32 %s206, 1
      %s208 = scalar_select %p205, %s206, %s207
      %p211 = pneg %p205
      %p212 = scmp.eq.s32.totalorder %s18, 1
      %p213 = por %p211, %p212
      %p214 = scmp.ne.s32.totalorder %s206, %s209
      %p215 = scmp.eq.s32.totalorder %s18, 0
      %p216 = por %p214, %p215
      %p217 = scmp.ne.s32.totalorder %s206, %s209
      %p218 = scmp.eq.s32.totalorder %s23, 1
      %p219 = por %p217, %p218
      %p220 = scmp.ne.s32.totalorder %s209, %s210
      %p221 = scmp.eq.s32.totalorder %s23, 0
      %p222 = por %p220, %p221
      %p223 = scmp.ne.s32.totalorder %s209, %s210
      %p224 = scmp.eq.s32.totalorder %s24, 1
      %p225 = por %p223, %p224
      %p227 = scmp.ne.s32.totalorder %s210, %s226
      %p228 = scmp.eq.s32.totalorder %s24, 0
      %p229 = por %p227, %p228
      %p230 = scmp.le.s32.totalorder 1, %s18
      %p231 = scmp.lt.s32.totalorder %s18, 3
      %p232 = pnand %p230, %p231
      %p233 = pneg %p232
      // Predicated region
      $region9: #{tpu_custom_call.1} parent=5 // pred_check
        _
      $region10: #{tpu_custom_call.1} parent=5 // pred_check_branch
        %235 = sbr.rel (%p232) target = $region12
      $region11: #{tpu_custom_call.1} parent=5 // pred_region
        %s236 = ssub.s32 %s18, 1
        // Predicated region
        $region13: #{tpu_custom_call.1} parent=11 // pred_check
          %p237 = pneg %p91
        $region14: #{tpu_custom_call.1} parent=11 // pred_check_branch
          %239 = sbr.rel (%p237) target = $region16
        $region15: #{tpu_custom_call.1} parent=11 // pred_region
          _
        $region16: #{tpu_custom_call.1} parent=11 // pred_fallthru
          _
        // Predicated region
        $region17: #{tpu_custom_call.1} parent=11 // pred_check
          %p240 = pneg %p112
        $region18: #{tpu_custom_call.1} parent=11 // pred_check_branch
          %242 = sbr.rel (%p240) target = $region20
        $region19: #{tpu_custom_call.1} parent=11 // pred_region
          _
        $region20: #{tpu_custom_call.1} parent=11 // pred_fallthru
          _
        // Predicated region
        $region21: #{tpu_custom_call.1} parent=11 // pred_check
          %p243 = pneg %p133
        $region22: #{tpu_custom_call.1} parent=11 // pred_check_branch
          %245 = sbr.rel (%p243) target = $region24
        $region23: #{tpu_custom_call.1} parent=11 // pred_region
          _
        $region24: #{tpu_custom_call.1} parent=11 // pred_fallthru
          _
        // Predicated region
        $region25: #{tpu_custom_call.1} parent=11 // pred_check
          %p246 = pneg %p154
        $region26: #{tpu_custom_call.1} parent=11 // pred_check_branch
          %248 = sbr.rel (%p246) target = $region28
        $region27: #{tpu_custom_call.1} parent=11 // pred_region
          %250 = vsyncadd [#allocation4], 0
          %s251 = sshll.u32 %s5, 4
          %s252 = int_to_ptr.hbm [resolvable:$true] %s251
          %s253 = sshll.u32 [#allocation3], 4
          %s254 = int_to_ptr.vmem [resolvable:$true] %s253
          %259 = dma.hbm_to_vmem [thread:$0]  %s252, 2048, %s254, [#allocation4], 256, 256, 16
        $region28: #{tpu_custom_call.1} parent=11 // pred_fallthru
          _
        // Predicated region
        $region29: #{tpu_custom_call.1} parent=11 // pred_check
          %p260 = pneg %p175
        $region30: #{tpu_custom_call.1} parent=11 // pred_check_branch
          %262 = sbr.rel (%p260) target = $region32
        $region31: #{tpu_custom_call.1} parent=11 // pred_region
          _
        $region32: #{tpu_custom_call.1} parent=11 // pred_fallthru
          _
        // Predicated region
        $region33: #{tpu_custom_call.1} parent=11 // pred_check
          %p263 = pneg %p196
        $region34: #{tpu_custom_call.1} parent=11 // pred_check_branch
          %265 = sbr.rel (%p263) target = $region36
        $region35: #{tpu_custom_call.1} parent=11 // pred_region
          _
        $region36: #{tpu_custom_call.1} parent=11 // pred_fallthru
          _
      $region12: #{tpu_custom_call.1} parent=5 // pred_fallthru
        _
      %p266 = scmp.lt.s32.totalorder %s18, 2
      // Predicated region
      $region37: #{tpu_custom_call.1} parent=5 // pred_check
        %p267 = pneg %p266
      $region38: #{tpu_custom_call.1} parent=5 // pred_check_branch
        %269 = sbr.rel (%p267) target = $region40
      $region39: #{tpu_custom_call.1} parent=5 // pred_region
        // Predicated region
        $region41: #{tpu_custom_call.1} parent=39 // pred_check
          %p270 = pneg %p38
        $region42: #{tpu_custom_call.1} parent=39 // pred_check_branch
          %272 = sbr.rel (%p270) target = $region44
        $region43: #{tpu_custom_call.1} parent=39 // pred_region
          %p273 = scmp.lt.s32.totalorder %s18, 1
          %s274 = scalar_select %p273, %s18, 1
          %s275 = smul.addr %s274, 2
          %s276 = smul.addr %s275, 4
          %s277 = scalar_lea.vmem %s0, %s276
        $region44: #{tpu_custom_call.1} parent=39 // pred_fallthru
          _
        // Predicated region
        $region45: #{tpu_custom_call.1} parent=39 // pred_check
          %p278 = pneg %p64
        $region46: #{tpu_custom_call.1} parent=39 // pred_check_branch
          %280 = sbr.rel (%p278) target = $region48
        $region47: #{tpu_custom_call.1} parent=39 // pred_region
          %p281 = scmp.lt.s32.totalorder %s18, 1
          %s282 = scalar_select %p281, %s18, 1
          %s283 = smul.addr %s282, 4
          %s284 = scalar_lea.vmem %s1, %s283
        $region48: #{tpu_custom_call.1} parent=39 // pred_fallthru
          _
      $region40: #{tpu_custom_call.1} parent=5 // pred_fallthru
        _
      %p285 = scmp.le.s32.totalorder 1, %s18
      %p286 = scmp.lt.s32.totalorder %s18, 3
      %p287 = pnand %p285, %p286
      %p288 = pneg %p287
      // Predicated region
      $region49: #{tpu_custom_call.1} parent=5 // pred_check
        _
      $region50: #{tpu_custom_call.1} parent=5 // pred_check_branch
        %290 = sbr.rel (%p287) target = $region52
      $region51: #{tpu_custom_call.1} parent=5 // pred_region
        %s291 = ssub.s32 %s18, 1
        // Predicated region
        $region53: #{tpu_custom_call.1} parent=51 // pred_check
          %p292 = pneg %p154
        $region54: #{tpu_custom_call.1} parent=51 // pred_check_branch
          %294 = sbr.rel (%p292) target = $region56
        $region55: #{tpu_custom_call.1} parent=51 // pred_region
          %296 = dma.done [#allocation4], 2048
        $region56: #{tpu_custom_call.1} parent=51 // pred_fallthru
          _
        %p297 = scmp.lt.s32.totalorder %s23, 1
        %s298 = scalar_select %p297, %s23, 1
        %s299 = smul.addr %s298, 2
        %s300 = smul.addr %s299, 4
        %s301 = scalar_lea.vmem %s0, %s300
        %p302 = pneg %p44
        %p303 = pneg %p41
        %p304 = scmp.lt.s32.totalorder %s23, 1
        %s305 = scalar_select %p304, %s23, 1
        %s306 = smul.addr %s305, 4
        %s307 = scalar_lea.vmem %s1, %s306
        %p308 = pneg %p70
        %p309 = pneg %p67
        %p310 = pneg %p91
        %p311 = pneg %p88
        %p312 = pneg %p112
        %p313 = pneg %p109
        %p314 = pneg %p133
        %p315 = pneg %p130
        %p316 = pneg %p154
        %p317 = pneg %p151
        %p318 = pneg %p175
        %p319 = pneg %p172
        %p320 = pneg %p196
        %p321 = pneg %p193
        %p322 = pneg %p222
        %p323 = pneg %p219
        %s324 = sand.u32 %s209, 1
        %s325 = scalar_lea.sflag [#allocation5], %s324
        %s326 = sand.u32 %s209, 1
        %s327 = smul.addr %s326, 8
        %s328 = scalar_lea.vmem [#allocation6], %s327
        %p329 = scmp.lt.s32.totalorder %s23, 1
        %s330 = scalar_select %p329, %s23, 1
        %s331 = smul.addr %s330, 2
        %s332 = smul.addr %s331, 4
        %s333 = scalar_lea.vmem %s0, %s332
        %p334 = scmp.lt.s32.totalorder %s23, 1
        %s335 = scalar_select %p334, %s23, 1
        %s336 = smul.addr %s335, 4
        %s337 = scalar_lea.vmem %s1, %s336
        %v338 = vld [vmem:[%s333] sm:$0xff]
        %v339 = vld [vmem:[%s337] sm:$0xf]
        %v340 = vld [vmem:[%s2] sm:$0x3f]
        %342 = vst [vmem:[#allocation1] ss:$2 sm:$0xff] %v338
        %v343 = vld.sshfl [vmem:[#allocation1] sm:$0xff pattern:$0x75316420]
        %v344 = vld.sshfl [vmem:[#allocation1 + $0x8] sm:$0xff pattern:$0x75316420]
        %vm345 = vcmask 31744
        %v347 = vsel %vm345, %v340, 0
        %vm349 = vcmask 1043456
        %v350 = vsel %vm349, %v343, 0
        %v352 = vsel %vm349, %v344, 0
        %354 = vmatpush.msra.mxu0 0.0
        %355 = vmatpush.msra.mxu0 0.0
        %356 = vmatpush.msra.mxu0 0.0
        %357 = vmatpush.msra.mxu0 0.0
        %358 = vmatpush.msra.mxu0 0.0
        %359 = vmatpush.msra.mxu0 0.0
        %360 = vmatpush.msra.mxu0 0.0
        %361 = vmatpush.msra.mxu0 0.0
        %362 = vmatpush.msra.mxu0 0.0
        %363 = vmatpush.msra.mxu0 0.0
        %364 = vmatpush.msra.mxu0 0.0
        %365 = vmatpush.msra.mxu0 0.0
        %366 = vmatpush.msra.mxu0 0.0
        %367 = vmatpush.msra.mxu0 0.0
        %368 = vmatpush.msra.mxu0 0.0
        %369 = vmatpush.msra.mxu0 %v350
        %370 = vmatmul.f32.gmra.mxu0 %v347
        %v371 = vpop.f32.mrf.mxu0
        %v372 = vadd.f32 0.0, %v371
        %373 = vdwg.mxu0
        %374 = vmatpush.msra.mxu0 0.0
        %375 = vmatpush.msra.mxu0 0.0
        %376 = vmatpush.msra.mxu0 0.0
        %377 = vmatpush.msra.mxu0 0.0
        %378 = vmatpush.msra.mxu0 0.0
        %379 = vmatpush.msra.mxu0 0.0
        %380 = vmatpush.msra.mxu0 0.0
        %381 = vmatpush.msra.mxu0 0.0
        %382 = vmatpush.msra.mxu0 0.0
        %383 = vmatpush.msra.mxu0 0.0
        %384 = vmatpush.msra.mxu0 0.0
        %385 = vmatpush.msra.mxu0 0.0
        %386 = vmatpush.msra.mxu0 0.0
        %387 = vmatpush.msra.mxu0 0.0
        %388 = vmatpush.msra.mxu0 0.0
        %389 = vmatpush.msra.mxu0 %v352
        %390 = vmatmul.f32.gmra.mxu0 %v347
        %v391 = vpop.f32.mrf.mxu0
        %v392 = vadd.f32 0.0, %v391
        %393 = vdwg.mxu0
        %v394 = vld [vmem:[%s3] sm:$0x3f]
        %v396 = vsel %vm345, %v394, 0
        %v399 = vsel %vm349, %v339, 0
        %401 = vmatpush.msra.mxu0 0.0
        %402 = vmatpush.msra.mxu0 0.0
        %403 = vmatpush.msra.mxu0 0.0
        %404 = vmatpush.msra.mxu0 0.0
        %405 = vmatpush.msra.mxu0 0.0
        %406 = vmatpush.msra.mxu0 0.0
        %407 = vmatpush.msra.mxu0 0.0
        %408 = vmatpush.msra.mxu0 0.0
        %409 = vmatpush.msra.mxu0 0.0
        %410 = vmatpush.msra.mxu0 0.0
        %411 = vmatpush.msra.mxu0 0.0
        %412 = vmatpush.msra.mxu0 0.0
        %413 = vmatpush.msra.mxu0 0.0
        %414 = vmatpush.msra.mxu0 0.0
        %415 = vmatpush.msra.mxu0 0.0
        %416 = vmatpush.msra.mxu0 %v399
        %417 = vmatmul.f32.gmra.mxu0 %v396
        %v418 = vpop.f32.mrf.mxu0
        %v419 = vadd.f32 0.0, %v418
        %420 = vdwg.mxu0
        %v421 = vld [vmem:[#allocation3] sm:$0xff]
        %v422 = vld [vmem:[#allocation3 + $0x8] sm:$0xff]
        %v423 = vld [vmem:[#allocation3 + $0x10] sm:$0xff]
        %v424 = vld [vmem:[#allocation3 + $0x18] sm:$0xff]
        %v425 = vld [vmem:[#allocation3 + $0x20] sm:$0xff]
        %v426 = vld [vmem:[#allocation3 + $0x28] sm:$0xff]
        %v427 = vld [vmem:[#allocation3 + $0x30] sm:$0xff]
        %v428 = vld [vmem:[#allocation3 + $0x38] sm:$0xff]
        %v429 = vld [vmem:[#allocation3 + $0x40] sm:$0xff]
        %v430 = vld [vmem:[#allocation3 + $0x48] sm:$0xff]
        %v431 = vld [vmem:[#allocation3 + $0x50] sm:$0xff]
        %v432 = vld [vmem:[#allocation3 + $0x58] sm:$0xff]
        %v433 = vld [vmem:[#allocation3 + $0x60] sm:$0xff]
        %v434 = vld [vmem:[#allocation3 + $0x68] sm:$0xff]
        %v435 = vld [vmem:[#allocation3 + $0x70] sm:$0xff]
        %v436 = vld [vmem:[#allocation3 + $0x78] sm:$0xff]
        %vm437 = vcmask 523264
        %v439 = vsel %vm437, %v419, 0
        %441 = vmatpush.msra.mxu0 0.0
        %442 = vmatpush.msra.mxu0 0.0
        %443 = vmatpush.msra.mxu0 0.0
        %444 = vmatpush.msra.mxu0 0.0
        %445 = vmatpush.msra.mxu0 0.0
        %446 = vmatpush.msra.mxu0 0.0
        %447 = vmatpush.msra.mxu0 0.0
        %448 = vmatpush.msra.mxu0 0.0
        %449 = vmatpush.msra.mxu0 %v435
        %450 = vmatpush.msra.mxu0 %v433
        %451 = vmatpush.msra.mxu0 %v431
        %452 = vmatpush.msra.mxu0 %v429
        %453 = vmatpush.msra.mxu0 %v427
        %454 = vmatpush.msra.mxu0 %v425
        %455 = vmatpush.msra.mxu0 %v423
        %456 = vmatpush.msra.mxu0 %v421
        %457 = vmatmul.f32.gmra.mxu0 %v439
        %v458 = vpop.f32.mrf.mxu0
        %v459 = vadd.f32 0.0, %v458
        %460 = vdwg.mxu0
        %461 = vmatpush.msra.mxu0 0.0
        %462 = vmatpush.msra.mxu0 0.0
        %463 = vmatpush.msra.mxu0 0.0
        %464 = vmatpush.msra.mxu0 0.0
        %465 = vmatpush.msra.mxu0 0.0
        %466 = vmatpush.msra.mxu0 0.0
        %467 = vmatpush.msra.mxu0 0.0
        %468 = vmatpush.msra.mxu0 0.0
        %469 = vmatpush.msra.mxu0 %v436
        %470 = vmatpush.msra.mxu0 %v434
        %471 = vmatpush.msra.mxu0 %v432
        %472 = vmatpush.msra.mxu0 %v430
        %473 = vmatpush.msra.mxu0 %v428
        %474 = vmatpush.msra.mxu0 %v426
        %475 = vmatpush.msra.mxu0 %v424
        %476 = vmatpush.msra.mxu0 %v422
        %477 = vmatmul.f32.gmra.mxu0 %v439
        %v478 = vpop.f32.mrf.mxu0
        %v479 = vadd.f32 0.0, %v478
        %480 = vdwg.mxu0
        %vm481 = vcmask 1048440
        %482 = vst.msk [vmem:[#allocation2] sm:$0xff] %vm481, 0.0
        %vm483 = vcmask 1044344
        %484 = vst.msk [vmem:[#allocation2 + $0x20] sm:$0xf] %vm483, 0.0
        %vm485 = vcmask 138240
        %486 = vst.msk [vmem:[#allocation2 + $0x18] sm:$0xff] %vm485, 0.0
        %vm487 = vcmask 134144
        %488 = vst.msk [vmem:[#allocation2 + $0x38] sm:$0xf] %vm487, 0.0
        %489 = vst [vmem:[#allocation2 + $0x8] sm:$0x3f] %v459
        %490 = vst [vmem:[#allocation2 + $0x10] sm:$0x3f] %v479
        %v493 = vrot.slane %v372, 2
        %v494 = vrot.slane %v392, 2
        %497 = vst [vmem:[#allocation2 + $0x8] sm:$0xc0] %v493
        %498 = vst [vmem:[#allocation2 + $0x10] sm:$0xc0] %v494
        %499 = vst [vmem:[#allocation2 + $0x28] sm:$0xf] %v493
        %500 = vst [vmem:[#allocation2 + $0x30] sm:$0xf] %v494
        %s501 = scalar_lea.vmem %s7, 2
        %v502 = vld [vmem:[%s501] ss:$4 sm:$0x3]
        %s503 = scalar_lea.vmem %s7, 3
        %v504 = vld [vmem:[%s503] ss:$4 sm:$0x3]
        %v505 = vld [vmem:[#allocation2] sm:$0xff]
        %v506 = vld [vmem:[#allocation2 + $0x8] sm:$0xff]
        %v507 = vld [vmem:[#allocation2 + $0x10] sm:$0xff]
        %v508 = vld [vmem:[#allocation2 + $0x20] sm:$0xf]
        %v509 = vld [vmem:[#allocation2 + $0x28] sm:$0xf]
        %v510 = vld [vmem:[#allocation2 + $0x30] sm:$0xf]
        %v511 = vld [vmem:[%s4] sm:$0x3]
        %518 = vrot.lane.b32.xlu0 %v505, 17
        %v519 = vpop.permute.xlu0 %518
        %520 = vrot.lane.b32.xlu0 %v506, 17
        %v521 = vpop.permute.xlu0 %520
        %522 = vrot.lane.b32.xlu0 %v507, 17
        %v523 = vpop.permute.xlu0 %522
        %524 = vrot.lane.b32.xlu0 %v508, 17
        %v525 = vpop.permute.xlu0 %524
        %526 = vrot.lane.b32.xlu0 %v509, 17
        %v527 = vpop.permute.xlu0 %526
        %528 = vrot.lane.b32.xlu0 %v510, 17
        %v529 = vpop.permute.xlu0 %528
        %v530 = vsel %vm485, %v519, %v521
        %v531 = vsel %vm485, %v521, %v523
        %v532 = vsel %vm485, %v525, %v527
        %v533 = vsel %vm485, %v527, %v529
        %vm536 = vcmask 97280
        %v538 = vsel %vm536, %v511, 0
        %v540 = vsel %vm349, %v532, 0
        %v542 = vsel %vm349, %v533, 0
        %544 = vmatpush.msra.mxu0 0.0
        %545 = vmatpush.msra.mxu0 0.0
        %546 = vmatpush.msra.mxu0 0.0
        %547 = vmatpush.msra.mxu0 0.0
        %548 = vmatpush.msra.mxu0 0.0
        %549 = vmatpush.msra.mxu0 0.0
        %550 = vmatpush.msra.mxu0 0.0
        %551 = vmatpush.msra.mxu0 0.0
        %552 = vmatpush.msra.mxu0 0.0
        %553 = vmatpush.msra.mxu0 0.0
        %554 = vmatpush.msra.mxu0 0.0
        %555 = vmatpush.msra.mxu0 0.0
        %556 = vmatpush.msra.mxu0 0.0
        %557 = vmatpush.msra.mxu0 0.0
        %558 = vmatpush.msra.mxu0 %v540
        %559 = vmatpush.msra.mxu0 %v530
        %560 = vmatmul.f32.gmra.mxu0 %v538
        %v561 = vpop.f32.mrf.mxu0
        %v562 = vadd.f32 0.0, %v561
        %563 = vdwg.mxu0
        %564 = vmatpush.msra.mxu0 0.0
        %565 = vmatpush.msra.mxu0 0.0
        %566 = vmatpush.msra.mxu0 0.0
        %567 = vmatpush.msra.mxu0 0.0
        %568 = vmatpush.msra.mxu0 0.0
        %569 = vmatpush.msra.mxu0 0.0
        %570 = vmatpush.msra.mxu0 0.0
        %571 = vmatpush.msra.mxu0 0.0
        %572 = vmatpush.msra.mxu0 0.0
        %573 = vmatpush.msra.mxu0 0.0
        %574 = vmatpush.msra.mxu0 0.0
        %575 = vmatpush.msra.mxu0 0.0
        %576 = vmatpush.msra.mxu0 0.0
        %577 = vmatpush.msra.mxu0 0.0
        %578 = vmatpush.msra.mxu0 %v542
        %579 = vmatpush.msra.mxu0 %v531
        %580 = vmatmul.f32.gmra.mxu0 %v538
        %v581 = vpop.f32.mrf.mxu0
        %v582 = vadd.f32 0.0, %v581
        %583 = vdwg.mxu0
        %v585 = vperm.slane %v502, 0
        %v586 = vperm.slane %v502, 1
        %v589 = vmul.f32 %v562, %v585
        %v590 = vmul.f32 %v582, %v586
        %v591 = vadd.f32 %v589, 0.0
        %v592 = vadd.f32 %v590, 0.0
        %s593 = scalar_lea.vmem %s4, 2
        %v594 = vld [vmem:[%s593] sm:$0x3]
        %595 = vrot.lane.b32.xlu0 %v505, 16
        %v596 = vpop.permute.xlu0 %595
        %597 = vrot.lane.b32.xlu0 %v506, 16
        %v598 = vpop.permute.xlu0 %597
        %599 = vrot.lane.b32.xlu0 %v507, 16
        %v600 = vpop.permute.xlu0 %599
        %601 = vrot.lane.b32.xlu0 %v508, 16
        %v602 = vpop.permute.xlu0 %601
        %603 = vrot.lane.b32.xlu0 %v509, 16
        %v604 = vpop.permute.xlu0 %603
        %605 = vrot.lane.b32.xlu0 %v510, 16
        %v606 = vpop.permute.xlu0 %605
        %vm607 = vcmask 130048
        %v608 = vsel %vm607, %v596, %v598
        %v609 = vsel %vm607, %v598, %v600
        %v610 = vsel %vm607, %v602, %v604
        %v611 = vsel %vm607, %v604, %v606
        %v615 = vsel %vm536, %v594, 0
        %v617 = vsel %vm349, %v610, 0
        %v619 = vsel %vm349, %v611, 0
        %621 = vmatpush.msra.mxu0 0.0
        %622 = vmatpush.msra.mxu0 0.0
        %623 = vmatpush.msra.mxu0 0.0
        %624 = vmatpush.msra.mxu0 0.0
        %625 = vmatpush.msra.mxu0 0.0
        %626 = vmatpush.msra.mxu0 0.0
        %627 = vmatpush.msra.mxu0 0.0
        %628 = vmatpush.msra.mxu0 0.0
        %629 = vmatpush.msra.mxu0 0.0
        %630 = vmatpush.msra.mxu0 0.0
        %631 = vmatpush.msra.mxu0 0.0
        %632 = vmatpush.msra.mxu0 0.0
        %633 = vmatpush.msra.mxu0 0.0
        %634 = vmatpush.msra.mxu0 0.0
        %635 = vmatpush.msra.mxu0 %v617
        %636 = vmatpush.msra.mxu0 %v608
        %637 = vmatmul.f32.gmra.mxu0 %v615
        %v638 = vpop.f32.mrf.mxu0
        %v639 = vadd.f32 0.0, %v638
        %640 = vdwg.mxu0
        %641 = vmatpush.msra.mxu0 0.0
        %642 = vmatpush.msra.mxu0 0.0
        %643 = vmatpush.msra.mxu0 0.0
        %644 = vmatpush.msra.mxu0 0.0
        %645 = vmatpush.msra.mxu0 0.0
        %646 = vmatpush.msra.mxu0 0.0
        %647 = vmatpush.msra.mxu0 0.0
        %648 = vmatpush.msra.mxu0 0.0
        %649 = vmatpush.msra.mxu0 0.0
        %650 = vmatpush.msra.mxu0 0.0
        %651 = vmatpush.msra.mxu0 0.0
        %652 = vmatpush.msra.mxu0 0.0
        %653 = vmatpush.msra.mxu0 0.0
        %654 = vmatpush.msra.mxu0 0.0
        %655 = vmatpush.msra.mxu0 %v619
        %656 = vmatpush.msra.mxu0 %v609
        %657 = vmatmul.f32.gmra.mxu0 %v615
        %v658 = vpop.f32.mrf.mxu0
        %v659 = vadd.f32 0.0, %v658
        %660 = vdwg.mxu0
        %v661 = vadd.f32 %v591, %v639
        %v662 = vadd.f32 %v592, %v659
        %s663 = scalar_lea.vmem %s4, 4
        %v664 = vld [vmem:[%s663] sm:$0x3]
        %665 = vrot.lane.b32.xlu0 %v505, 15
        %v666 = vpop.permute.xlu0 %665
        %667 = vrot.lane.b32.xlu0 %v506, 15
        %v668 = vpop.permute.xlu0 %667
        %669 = vrot.lane.b32.xlu0 %v507, 15
        %v670 = vpop.permute.xlu0 %669
        %671 = vrot.lane.b32.xlu0 %v508, 15
        %v672 = vpop.permute.xlu0 %671
        %673 = vrot.lane.b32.xlu0 %v509, 15
        %v674 = vpop.permute.xlu0 %673
        %675 = vrot.lane.b32.xlu0 %v510, 15
        %v676 = vpop.permute.xlu0 %675
        %vm677 = vcmask 121856
        %v678 = vsel %vm677, %v666, %v668
        %v679 = vsel %vm677, %v668, %v670
        %v680 = vsel %vm677, %v672, %v674
        %v681 = vsel %vm677, %v674, %v676
        %v685 = vsel %vm536, %v664, 0
        %v687 = vsel %vm349, %v680, 0
        %v689 = vsel %vm349, %v681, 0
        %691 = vmatpush.msra.mxu0 0.0
        %692 = vmatpush.msra.mxu0 0.0
        %693 = vmatpush.msra.mxu0 0.0
        %694 = vmatpush.msra.mxu0 0.0
        %695 = vmatpush.msra.mxu0 0.0
        %696 = vmatpush.msra.mxu0 0.0
        %697 = vmatpush.msra.mxu0 0.0
        %698 = vmatpush.msra.mxu0 0.0
        %699 = vmatpush.msra.mxu0 0.0
        %700 = vmatpush.msra.mxu0 0.0
        %701 = vmatpush.msra.mxu0 0.0
        %702 = vmatpush.msra.mxu0 0.0
        %703 = vmatpush.msra.mxu0 0.0
        %704 = vmatpush.msra.mxu0 0.0
        %705 = vmatpush.msra.mxu0 %v687
        %706 = vmatpush.msra.mxu0 %v678
        %707 = vmatmul.f32.gmra.mxu0 %v685
        %v708 = vpop.f32.mrf.mxu0
        %v709 = vadd.f32 0.0, %v708
        %710 = vdwg.mxu0
        %711 = vmatpush.msra.mxu0 0.0
        %712 = vmatpush.msra.mxu0 0.0
        %713 = vmatpush.msra.mxu0 0.0
        %714 = vmatpush.msra.mxu0 0.0
        %715 = vmatpush.msra.mxu0 0.0
        %716 = vmatpush.msra.mxu0 0.0
        %717 = vmatpush.msra.mxu0 0.0
        %718 = vmatpush.msra.mxu0 0.0
        %719 = vmatpush.msra.mxu0 0.0
        %720 = vmatpush.msra.mxu0 0.0
        %721 = vmatpush.msra.mxu0 0.0
        %722 = vmatpush.msra.mxu0 0.0
        %723 = vmatpush.msra.mxu0 0.0
        %724 = vmatpush.msra.mxu0 0.0
        %725 = vmatpush.msra.mxu0 %v689
        %726 = vmatpush.msra.mxu0 %v679
        %727 = vmatmul.f32.gmra.mxu0 %v685
        %v728 = vpop.f32.mrf.mxu0
        %v729 = vadd.f32 0.0, %v728
        %730 = vdwg.mxu0
        %v732 = vperm.slane %v504, 0
        %v733 = vperm.slane %v504, 1
        %v736 = vmul.f32 %v709, %v732
        %v737 = vmul.f32 %v729, %v733
        %v738 = vadd.f32 %v661, %v736
        %v739 = vadd.f32 %v662, %v737
        %s740 = scalar_lea.vmem %s4, 6
        %v741 = vld [vmem:[%s740] sm:$0x3]
        %742 = vrot.lane.b32.xlu0 %v505, 1
        %v743 = vpop.permute.xlu0 %742
        %744 = vrot.lane.b32.xlu0 %v506, 1
        %v745 = vpop.permute.xlu0 %744
        %746 = vrot.lane.b32.xlu0 %v507, 1
        %v747 = vpop.permute.xlu0 %746
        %748 = vrot.lane.b32.xlu0 %v508, 1
        %v749 = vpop.permute.xlu0 %748
        %750 = vrot.lane.b32.xlu0 %v509, 1
        %v751 = vpop.permute.xlu0 %750
        %752 = vrot.lane.b32.xlu0 %v510, 1
        %v753 = vpop.permute.xlu0 %752
        %vm754 = vcmask 7168
        %v755 = vsel %vm754, %v743, %v745
        %v756 = vsel %vm754, %v745, %v747
        %v757 = vsel %vm754, %v749, %v751
        %v758 = vsel %vm754, %v751, %v753
        %v762 = vsel %vm536, %v741, 0
        %v764 = vsel %vm349, %v757, 0
        %v766 = vsel %vm349, %v758, 0
        %768 = vmatpush.msra.mxu0 0.0
        %769 = vmatpush.msra.mxu0 0.0
        %770 = vmatpush.msra.mxu0 0.0
        %771 = vmatpush.msra.mxu0 0.0
        %772 = vmatpush.msra.mxu0 0.0
        %773 = vmatpush.msra.mxu0 0.0
        %774 = vmatpush.msra.mxu0 0.0
        %775 = vmatpush.msra.mxu0 0.0
        %776 = vmatpush.msra.mxu0 0.0
        %777 = vmatpush.msra.mxu0 0.0
        %778 = vmatpush.msra.mxu0 0.0
        %779 = vmatpush.msra.mxu0 0.0
        %780 = vmatpush.msra.mxu0 0.0
        %781 = vmatpush.msra.mxu0 0.0
        %782 = vmatpush.msra.mxu0 %v764
        %783 = vmatpush.msra.mxu0 %v755
        %784 = vmatmul.f32.gmra.mxu0 %v762
        %v785 = vpop.f32.mrf.mxu0
        %v786 = vadd.f32 0.0, %v785
        %787 = vdwg.mxu0
        %788 = vmatpush.msra.mxu0 0.0
        %789 = vmatpush.msra.mxu0 0.0
        %790 = vmatpush.msra.mxu0 0.0
        %791 = vmatpush.msra.mxu0 0.0
        %792 = vmatpush.msra.mxu0 0.0
        %793 = vmatpush.msra.mxu0 0.0
        %794 = vmatpush.msra.mxu0 0.0
        %795 = vmatpush.msra.mxu0 0.0
        %796 = vmatpush.msra.mxu0 0.0
        %797 = vmatpush.msra.mxu0 0.0
        %798 = vmatpush.msra.mxu0 0.0
        %799 = vmatpush.msra.mxu0 0.0
        %800 = vmatpush.msra.mxu0 0.0
        %801 = vmatpush.msra.mxu0 0.0
        %802 = vmatpush.msra.mxu0 %v766
        %803 = vmatpush.msra.mxu0 %v756
        %804 = vmatmul.f32.gmra.mxu0 %v762
        %v805 = vpop.f32.mrf.mxu0
        %v806 = vadd.f32 0.0, %v805
        %807 = vdwg.mxu0
        %v808 = vmul.f32 %v786, %v585
        %v809 = vmul.f32 %v806, %v586
        %v810 = vadd.f32 %v738, %v808
        %v811 = vadd.f32 %v739, %v809
        %s812 = scalar_lea.vmem %s4, 8
        %v813 = vld [vmem:[%s812] sm:$0x3]
        %v815 = vsel %vm536, %v813, 0
        %v817 = vsel %vm349, %v509, 0
        %v819 = vsel %vm349, %v510, 0
        %821 = vmatpush.msra.mxu0 0.0
        %822 = vmatpush.msra.mxu0 0.0
        %823 = vmatpush.msra.mxu0 0.0
        %824 = vmatpush.msra.mxu0 0.0
        %825 = vmatpush.msra.mxu0 0.0
        %826 = vmatpush.msra.mxu0 0.0
        %827 = vmatpush.msra.mxu0 0.0
        %828 = vmatpush.msra.mxu0 0.0
        %829 = vmatpush.msra.mxu0 0.0
        %830 = vmatpush.msra.mxu0 0.0
        %831 = vmatpush.msra.mxu0 0.0
        %832 = vmatpush.msra.mxu0 0.0
        %833 = vmatpush.msra.mxu0 0.0
        %834 = vmatpush.msra.mxu0 0.0
        %835 = vmatpush.msra.mxu0 %v817
        %836 = vmatpush.msra.mxu0 %v506
        %837 = vmatmul.f32.gmra.mxu0 %v815
        %v838 = vpop.f32.mrf.mxu0
        %v839 = vadd.f32 0.0, %v838
        %840 = vdwg.mxu0
        %841 = vmatpush.msra.mxu0 0.0
        %842 = vmatpush.msra.mxu0 0.0
        %843 = vmatpush.msra.mxu0 0.0
        %844 = vmatpush.msra.mxu0 0.0
        %845 = vmatpush.msra.mxu0 0.0
        %846 = vmatpush.msra.mxu0 0.0
        %847 = vmatpush.msra.mxu0 0.0
        %848 = vmatpush.msra.mxu0 0.0
        %849 = vmatpush.msra.mxu0 0.0
        %850 = vmatpush.msra.mxu0 0.0
        %851 = vmatpush.msra.mxu0 0.0
        %852 = vmatpush.msra.mxu0 0.0
        %853 = vmatpush.msra.mxu0 0.0
        %854 = vmatpush.msra.mxu0 0.0
        %855 = vmatpush.msra.mxu0 %v819
        %856 = vmatpush.msra.mxu0 %v507
        %857 = vmatmul.f32.gmra.mxu0 %v815
        %v858 = vpop.f32.mrf.mxu0
        %v859 = vadd.f32 0.0, %v858
        %860 = vdwg.mxu0
        %v861 = vadd.f32 %v810, %v839
        %v862 = vadd.f32 %v811, %v859
        %v863 = vld [vmem:[#allocation2 + $0x8] sm:$0xff]
        %v864 = vld [vmem:[#allocation2 + $0x10] sm:$0xff]
        %v865 = vld [vmem:[#allocation2 + $0x18] sm:$0xff]
        %v866 = vld [vmem:[#allocation2 + $0x28] sm:$0xf]
        %v867 = vld [vmem:[#allocation2 + $0x30] sm:$0xf]
        %v868 = vld [vmem:[#allocation2 + $0x38] sm:$0xf]
        %s869 = scalar_lea.vmem %s4, 10
        %v870 = vld [vmem:[%s869] sm:$0x3]
        %877 = vrot.lane.b32.xlu0 %v863, 127
        %v878 = vpop.permute.xlu0 %877
        %879 = vrot.lane.b32.xlu0 %v864, 127
        %v880 = vpop.permute.xlu0 %879
        %881 = vrot.lane.b32.xlu0 %v865, 127
        %v882 = vpop.permute.xlu0 %881
        %883 = vrot.lane.b32.xlu0 %v866, 127
        %v884 = vpop.permute.xlu0 %883
        %885 = vrot.lane.b32.xlu0 %v867, 127
        %v886 = vpop.permute.xlu0 %885
        %887 = vrot.lane.b32.xlu0 %v868, 127
        %v888 = vpop.permute.xlu0 %887
        %vm889 = vcmask 1039360
        %v890 = vsel %vm889, %v878, %v880
        %v891 = vsel %vm889, %v880, %v882
        %v892 = vsel %vm889, %v884, %v886
        %v893 = vsel %vm889, %v886, %v888
        %v897 = vsel %vm536, %v870, 0
        %v899 = vsel %vm349, %v892, 0
        %v901 = vsel %vm349, %v893, 0
        %903 = vmatpush.msra.mxu0 0.0
        %904 = vmatpush.msra.mxu0 0.0
        %905 = vmatpush.msra.mxu0 0.0
        %906 = vmatpush.msra.mxu0 0.0
        %907 = vmatpush.msra.mxu0 0.0
        %908 = vmatpush.msra.mxu0 0.0
        %909 = vmatpush.msra.mxu0 0.0
        %910 = vmatpush.msra.mxu0 0.0
        %911 = vmatpush.msra.mxu0 0.0
        %912 = vmatpush.msra.mxu0 0.0
        %913 = vmatpush.msra.mxu0 0.0
        %914 = vmatpush.msra.mxu0 0.0
        %915 = vmatpush.msra.mxu0 0.0
        %916 = vmatpush.msra.mxu0 0.0
        %917 = vmatpush.msra.mxu0 %v899
        %918 = vmatpush.msra.mxu0 %v890
        %919 = vmatmul.f32.gmra.mxu0 %v897
        %v920 = vpop.f32.mrf.mxu0
        %v921 = vadd.f32 0.0, %v920
        %922 = vdwg.mxu0
        %923 = vmatpush.msra.mxu0 0.0
        %924 = vmatpush.msra.mxu0 0.0
        %925 = vmatpush.msra.mxu0 0.0
        %926 = vmatpush.msra.mxu0 0.0
        %927 = vmatpush.msra.mxu0 0.0
        %928 = vmatpush.msra.mxu0 0.0
        %929 = vmatpush.msra.mxu0 0.0
        %930 = vmatpush.msra.mxu0 0.0
        %931 = vmatpush.msra.mxu0 0.0
        %932 = vmatpush.msra.mxu0 0.0
        %933 = vmatpush.msra.mxu0 0.0
        %934 = vmatpush.msra.mxu0 0.0
        %935 = vmatpush.msra.mxu0 0.0
        %936 = vmatpush.msra.mxu0 0.0
        %937 = vmatpush.msra.mxu0 %v901
        %938 = vmatpush.msra.mxu0 %v891
        %939 = vmatmul.f32.gmra.mxu0 %v897
        %v940 = vpop.f32.mrf.mxu0
        %v941 = vadd.f32 0.0, %v940
        %942 = vdwg.mxu0
        %v943 = vmul.f32 %v921, %v732
        %v944 = vmul.f32 %v941, %v733
        %v945 = vadd.f32 %v861, %v943
        %v946 = vadd.f32 %v862, %v944
        %s947 = scalar_lea.vmem %s4, 12
        %v948 = vld [vmem:[%s947] sm:$0x3]
        %949 = vrot.lane.b32.xlu0 %v863, 113
        %v950 = vpop.permute.xlu0 %949
        %951 = vrot.lane.b32.xlu0 %v864, 113
        %v952 = vpop.permute.xlu0 %951
        %953 = vrot.lane.b32.xlu0 %v865, 113
        %v954 = vpop.permute.xlu0 %953
        %955 = vrot.lane.b32.xlu0 %v866, 113
        %v956 = vpop.permute.xlu0 %955
        %957 = vrot.lane.b32.xlu0 %v867, 113
        %v958 = vpop.permute.xlu0 %957
        %959 = vrot.lane.b32.xlu0 %v868, 113
        %v960 = vpop.permute.xlu0 %959
        %vm961 = vcmask 924672
        %v962 = vsel %vm961, %v950, %v952
        %v963 = vsel %vm961, %v952, %v954
        %v964 = vsel %vm961, %v956, %v958
        %v965 = vsel %vm961, %v958, %v960
        %v969 = vsel %vm536, %v948, 0
        %v971 = vsel %vm349, %v964, 0
        %v973 = vsel %vm349, %v965, 0
        %975 = vmatpush.msra.mxu0 0.0
        %976 = vmatpush.msra.mxu0 0.0
        %977 = vmatpush.msra.mxu0 0.0
        %978 = vmatpush.msra.mxu0 0.0
        %979 = vmatpush.msra.mxu0 0.0
        %980 = vmatpush.msra.mxu0 0.0
        %981 = vmatpush.msra.mxu0 0.0
        %982 = vmatpush.msra.mxu0 0.0
        %983 = vmatpush.msra.mxu0 0.0
        %984 = vmatpush.msra.mxu0 0.0
        %985 = vmatpush.msra.mxu0 0.0
        %986 = vmatpush.msra.mxu0 0.0
        %987 = vmatpush.msra.mxu0 0.0
        %988 = vmatpush.msra.mxu0 0.0
        %989 = vmatpush.msra.mxu0 %v971
        %990 = vmatpush.msra.mxu0 %v962
        %991 = vmatmul.f32.gmra.mxu0 %v969
        %v992 = vpop.f32.mrf.mxu0
        %v993 = vadd.f32 0.0, %v992
        %994 = vdwg.mxu0
        %995 = vmatpush.msra.mxu0 0.0
        %996 = vmatpush.msra.mxu0 0.0
        %997 = vmatpush.msra.mxu0 0.0
        %998 = vmatpush.msra.mxu0 0.0
        %999 = vmatpush.msra.mxu0 0.0
        %1000 = vmatpush.msra.mxu0 0.0
        %1001 = vmatpush.msra.mxu0 0.0
        %1002 = vmatpush.msra.mxu0 0.0
        %1003 = vmatpush.msra.mxu0 0.0
        %1004 = vmatpush.msra.mxu0 0.0
        %1005 = vmatpush.msra.mxu0 0.0
        %1006 = vmatpush.msra.mxu0 0.0
        %1007 = vmatpush.msra.mxu0 0.0
        %1008 = vmatpush.msra.mxu0 0.0
        %1009 = vmatpush.msra.mxu0 %v973
        %1010 = vmatpush.msra.mxu0 %v963
        %1011 = vmatmul.f32.gmra.mxu0 %v969
        %v1012 = vpop.f32.mrf.mxu0
        %v1013 = vadd.f32 0.0, %v1012
        %1014 = vdwg.mxu0
        %v1015 = vmul.f32 %v993, %v585
        %v1016 = vmul.f32 %v1013, %v586
        %v1017 = vadd.f32 %v945, %v1015
        %v1018 = vadd.f32 %v946, %v1016
        %s1019 = scalar_lea.vmem %s4, 14
        %v1020 = vld [vmem:[%s1019] sm:$0x3]
        %1021 = vrot.lane.b32.xlu0 %v863, 112
        %v1022 = vpop.permute.xlu0 %1021
        %1023 = vrot.lane.b32.xlu0 %v864, 112
        %v1024 = vpop.permute.xlu0 %1023
        %1025 = vrot.lane.b32.xlu0 %v865, 112
        %v1026 = vpop.permute.xlu0 %1025
        %1027 = vrot.lane.b32.xlu0 %v866, 112
        %v1028 = vpop.permute.xlu0 %1027
        %1029 = vrot.lane.b32.xlu0 %v867, 112
        %v1030 = vpop.permute.xlu0 %1029
        %1031 = vrot.lane.b32.xlu0 %v868, 112
        %v1032 = vpop.permute.xlu0 %1031
        %vm1033 = vcmask 916480
        %v1034 = vsel %vm1033, %v1022, %v1024
        %v1035 = vsel %vm1033, %v1024, %v1026
        %v1036 = vsel %vm1033, %v1028, %v1030
        %v1037 = vsel %vm1033, %v1030, %v1032
        %v1041 = vsel %vm536, %v1020, 0
        %v1043 = vsel %vm349, %v1036, 0
        %v1045 = vsel %vm349, %v1037, 0
        %1047 = vmatpush.msra.mxu0 0.0
        %1048 = vmatpush.msra.mxu0 0.0
        %1049 = vmatpush.msra.mxu0 0.0
        %1050 = vmatpush.msra.mxu0 0.0
        %1051 = vmatpush.msra.mxu0 0.0
        %1052 = vmatpush.msra.mxu0 0.0
        %1053 = vmatpush.msra.mxu0 0.0
        %1054 = vmatpush.msra.mxu0 0.0
        %1055 = vmatpush.msra.mxu0 0.0
        %1056 = vmatpush.msra.mxu0 0.0
        %1057 = vmatpush.msra.mxu0 0.0
        %1058 = vmatpush.msra.mxu0 0.0
        %1059 = vmatpush.msra.mxu0 0.0
        %1060 = vmatpush.msra.mxu0 0.0
        %1061 = vmatpush.msra.mxu0 %v1043
        %1062 = vmatpush.msra.mxu0 %v1034
        %1063 = vmatmul.f32.gmra.mxu0 %v1041
        %v1064 = vpop.f32.mrf.mxu0
        %v1065 = vadd.f32 0.0, %v1064
        %1066 = vdwg.mxu0
        %1067 = vmatpush.msra.mxu0 0.0
        %1068 = vmatpush.msra.mxu0 0.0
        %1069 = vmatpush.msra.mxu0 0.0
        %1070 = vmatpush.msra.mxu0 0.0
        %1071 = vmatpush.msra.mxu0 0.0
        %1072 = vmatpush.msra.mxu0 0.0
        %1073 = vmatpush.msra.mxu0 0.0
        %1074 = vmatpush.msra.mxu0 0.0
        %1075 = vmatpush.msra.mxu0 0.0
        %1076 = vmatpush.msra.mxu0 0.0
        %1077 = vmatpush.msra.mxu0 0.0
        %1078 = vmatpush.msra.mxu0 0.0
        %1079 = vmatpush.msra.mxu0 0.0
        %1080 = vmatpush.msra.mxu0 0.0
        %1081 = vmatpush.msra.mxu0 %v1045
        %1082 = vmatpush.msra.mxu0 %v1035
        %1083 = vmatmul.f32.gmra.mxu0 %v1041
        %v1084 = vpop.f32.mrf.mxu0
        %v1085 = vadd.f32 0.0, %v1084
        %1086 = vdwg.mxu0
        %v1087 = vadd.f32 %v1017, %v1065
        %v1088 = vadd.f32 %v1018, %v1085
        %s1089 = scalar_lea.vmem %s4, 16
        %v1090 = vld [vmem:[%s1089] sm:$0x3]
        %1091 = vrot.lane.b32.xlu0 %v863, 111
        %v1092 = vpop.permute.xlu0 %1091
        %1093 = vrot.lane.b32.xlu0 %v864, 111
        %v1094 = vpop.permute.xlu0 %1093
        %1095 = vrot.lane.b32.xlu0 %v865, 111
        %v1096 = vpop.permute.xlu0 %1095
        %1097 = vrot.lane.b32.xlu0 %v866, 111
        %v1098 = vpop.permute.xlu0 %1097
        %1099 = vrot.lane.b32.xlu0 %v867, 111
        %v1100 = vpop.permute.xlu0 %1099
        %1101 = vrot.lane.b32.xlu0 %v868, 111
        %v1102 = vpop.permute.xlu0 %1101
        %vm1103 = vcmask 908288
        %v1104 = vsel %vm1103, %v1092, %v1094
        %v1105 = vsel %vm1103, %v1094, %v1096
        %v1106 = vsel %vm1103, %v1098, %v1100
        %v1107 = vsel %vm1103, %v1100, %v1102
        %v1111 = vsel %vm536, %v1090, 0
        %v1113 = vsel %vm349, %v1106, 0
        %v1115 = vsel %vm349, %v1107, 0
        %1117 = vmatpush.msra.mxu0 0.0
        %1118 = vmatpush.msra.mxu0 0.0
        %1119 = vmatpush.msra.mxu0 0.0
        %1120 = vmatpush.msra.mxu0 0.0
        %1121 = vmatpush.msra.mxu0 0.0
        %1122 = vmatpush.msra.mxu0 0.0
        %1123 = vmatpush.msra.mxu0 0.0
        %1124 = vmatpush.msra.mxu0 0.0
        %1125 = vmatpush.msra.mxu0 0.0
        %1126 = vmatpush.msra.mxu0 0.0
        %1127 = vmatpush.msra.mxu0 0.0
        %1128 = vmatpush.msra.mxu0 0.0
        %1129 = vmatpush.msra.mxu0 0.0
        %1130 = vmatpush.msra.mxu0 0.0
        %1131 = vmatpush.msra.mxu0 %v1113
        %1132 = vmatpush.msra.mxu0 %v1104
        %1133 = vmatmul.f32.gmra.mxu0 %v1111
        %v1134 = vpop.f32.mrf.mxu0
        %v1135 = vadd.f32 0.0, %v1134
        %1136 = vdwg.mxu0
        %1137 = vmatpush.msra.mxu0 0.0
        %1138 = vmatpush.msra.mxu0 0.0
        %1139 = vmatpush.msra.mxu0 0.0
        %1140 = vmatpush.msra.mxu0 0.0
        %1141 = vmatpush.msra.mxu0 0.0
        %1142 = vmatpush.msra.mxu0 0.0
        %1143 = vmatpush.msra.mxu0 0.0
        %1144 = vmatpush.msra.mxu0 0.0
        %1145 = vmatpush.msra.mxu0 0.0
        %1146 = vmatpush.msra.mxu0 0.0
        %1147 = vmatpush.msra.mxu0 0.0
        %1148 = vmatpush.msra.mxu0 0.0
        %1149 = vmatpush.msra.mxu0 0.0
        %1150 = vmatpush.msra.mxu0 0.0
        %1151 = vmatpush.msra.mxu0 %v1115
        %1152 = vmatpush.msra.mxu0 %v1105
        %1153 = vmatmul.f32.gmra.mxu0 %v1111
        %v1154 = vpop.f32.mrf.mxu0
        %v1155 = vadd.f32 0.0, %v1154
        %1156 = vdwg.mxu0
        %v1157 = vmul.f32 %v1135, %v732
        %v1158 = vmul.f32 %v1155, %v733
        %v1159 = vadd.f32 %v1087, %v1157
        %v1160 = vadd.f32 %v1088, %v1158
        %v1161 = vld [vmem:[%s7] ss:$4 sm:$0x3]
        %v1162 = vmul.f32 %v1159, 0.21875
        %v1163 = vmul.f32 %v1160, 0.21875
        %v1166 = vrot.slane %v1163, 7
        %vm1167 = vcmask 1040384
        %v1168 = vsel %vm1167, %v1162, %v1166
        %v1170 = vadd.f32 %v1161, %v1168
        %s1171 = scalar_lea.vmem %s7, 1
        %v1172 = vld [vmem:[%s1171] ss:$4 sm:$0x3]
        %1173 = vst [vmem:[#allocation1] sm:$0xff] %v1162
        %1174 = vst [vmem:[#allocation1 + $0x9] sm:$0xff] %v1163
        %s1175 = scalar_lea.vmem [#allocation1], 1
        %v1176 = vld [vmem:[%s1175] ss:$9 sm:$0xff]
        %v1178 = vadd.f32 %v1172, %v1176
        %v1179 = vld [vmem:[%s6] sm:$0xff]
        %v1180 = vld [vmem:[%s6 + $0x8] sm:$0xff]
        %v1181 = vld [vmem:[%s6 + $0x10] sm:$0xff]
        %v1182 = vld [vmem:[%s6 + $0x18] sm:$0xff]
        %v1183 = vld [vmem:[%s6 + $0x20] sm:$0xff]
        %v1184 = vld [vmem:[%s6 + $0x28] sm:$0xff]
        %v1185 = vld [vmem:[%s6 + $0x30] sm:$0xff]
        %v1186 = vld [vmem:[%s6 + $0x38] sm:$0xff]
        %1188 = vset.pattern.permute.xlu0 1
        %1189 = vperm.xlu0 %1188, %v1179
        %v1190 = vpop.permute.xlu0 %1189
        %1193 = vset.pattern.permute.xlu0 1
        %1194 = vperm.xlu0 %1193, %v1180
        %v1195 = vpop.permute.xlu0 %1194
        %1198 = vset.pattern.permute.xlu0 1
        %1199 = vperm.xlu0 %1198, %v1181
        %v1200 = vpop.permute.xlu0 %1199
        %1203 = vset.pattern.permute.xlu0 1
        %1204 = vperm.xlu0 %1203, %v1182
        %v1205 = vpop.permute.xlu0 %1204
        %1208 = vset.pattern.permute.xlu0 1
        %1209 = vperm.xlu0 %1208, %v1183
        %v1210 = vpop.permute.xlu0 %1209
        %1213 = vset.pattern.permute.xlu0 1
        %1214 = vperm.xlu0 %1213, %v1184
        %v1215 = vpop.permute.xlu0 %1214
        %1218 = vset.pattern.permute.xlu0 1
        %1219 = vperm.xlu0 %1218, %v1185
        %v1220 = vpop.permute.xlu0 %1219
        %1223 = vset.pattern.permute.xlu0 1
        %1224 = vperm.xlu0 %1223, %v1186
        %v1225 = vpop.permute.xlu0 %1224
        %v1228 = vperm.slane %v1170, 0
        %v1229 = vperm.slane %v1170, 1
        %v1232 = vsub.f32 %v1190, %v1228
        %v1233 = vsub.f32 %v1190, %v1229
        %v1234 = vsub.f32 %v1195, %v1228
        %v1235 = vsub.f32 %v1195, %v1229
        %v1236 = vsub.f32 %v1200, %v1228
        %v1237 = vsub.f32 %v1200, %v1229
        %v1238 = vsub.f32 %v1205, %v1228
        %v1239 = vsub.f32 %v1205, %v1229
        %v1240 = vsub.f32 %v1210, %v1228
        %v1241 = vsub.f32 %v1210, %v1229
        %v1242 = vsub.f32 %v1215, %v1228
        %v1243 = vsub.f32 %v1215, %v1229
        %v1244 = vsub.f32 %v1220, %v1228
        %v1245 = vsub.f32 %v1220, %v1229
        %v1246 = vsub.f32 %v1225, %v1228
        %v1247 = vsub.f32 %v1225, %v1229
        %v1248 = vand.u32 2147483647, %v1232
        %v1249 = vand.u32 2147483647, %v1233
        %v1250 = vand.u32 2147483647, %v1234
        %v1251 = vand.u32 2147483647, %v1235
        %v1252 = vand.u32 2147483647, %v1236
        %v1253 = vand.u32 2147483647, %v1237
        %v1254 = vand.u32 2147483647, %v1238
        %v1255 = vand.u32 2147483647, %v1239
        %v1256 = vand.u32 2147483647, %v1240
        %v1257 = vand.u32 2147483647, %v1241
        %v1258 = vand.u32 2147483647, %v1242
        %v1259 = vand.u32 2147483647, %v1243
        %v1260 = vand.u32 2147483647, %v1244
        %v1261 = vand.u32 2147483647, %v1245
        %v1262 = vand.u32 2147483647, %v1246
        %v1263 = vand.u32 2147483647, %v1247
        %v1264 = vsub.f32 1.0, %v1248
        %v1265 = vsub.f32 1.0, %v1249
        %v1266 = vsub.f32 1.0, %v1250
        %v1267 = vsub.f32 1.0, %v1251
        %v1268 = vsub.f32 1.0, %v1252
        %v1269 = vsub.f32 1.0, %v1253
        %v1270 = vsub.f32 1.0, %v1254
        %v1271 = vsub.f32 1.0, %v1255
        %v1272 = vsub.f32 1.0, %v1256
        %v1273 = vsub.f32 1.0, %v1257
        %v1274 = vsub.f32 1.0, %v1258
        %v1275 = vsub.f32 1.0, %v1259
        %v1276 = vsub.f32 1.0, %v1260
        %v1277 = vsub.f32 1.0, %v1261
        %v1278 = vsub.f32 1.0, %v1262
        %v1279 = vsub.f32 1.0, %v1263
        %v1280 = vmax.f32 %v1264, 0.0
        %v1281 = vmax.f32 %v1265, 0.0
        %v1282 = vmax.f32 %v1266, 0.0
        %v1283 = vmax.f32 %v1267, 0.0
        %v1284 = vmax.f32 %v1268, 0.0
        %v1285 = vmax.f32 %v1269, 0.0
        %v1286 = vmax.f32 %v1270, 0.0
        %v1287 = vmax.f32 %v1271, 0.0
        %v1288 = vmax.f32 %v1272, 0.0
        %v1289 = vmax.f32 %v1273, 0.0
        %v1290 = vmax.f32 %v1274, 0.0
        %v1291 = vmax.f32 %v1275, 0.0
        %v1292 = vmax.f32 %v1276, 0.0
        %v1293 = vmax.f32 %v1277, 0.0
        %v1294 = vmax.f32 %v1278, 0.0
        %v1295 = vmax.f32 %v1279, 0.0
        %1296 = vset.pattern.permute.xlu0 0
        %1297 = vperm.xlu0 %1296, %v1179
        %v1298 = vpop.permute.xlu0 %1297
        %1300 = vset.pattern.permute.xlu0 0
        %1301 = vperm.xlu0 %1300, %v1180
        %v1302 = vpop.permute.xlu0 %1301
        %1304 = vset.pattern.permute.xlu0 0
        %1305 = vperm.xlu0 %1304, %v1181
        %v1306 = vpop.permute.xlu0 %1305
        %1308 = vset.pattern.permute.xlu0 0
        %1309 = vperm.xlu0 %1308, %v1182
        %v1310 = vpop.permute.xlu0 %1309
        %1312 = vset.pattern.permute.xlu0 0
        %1313 = vperm.xlu0 %1312, %v1183
        %v1314 = vpop.permute.xlu0 %1313
        %1316 = vset.pattern.permute.xlu0 0
        %1317 = vperm.xlu0 %1316, %v1184
        %v1318 = vpop.permute.xlu0 %1317
        %1320 = vset.pattern.permute.xlu0 0
        %1321 = vperm.xlu0 %1320, %v1185
        %v1322 = vpop.permute.xlu0 %1321
        %1324 = vset.pattern.permute.xlu0 0
        %1325 = vperm.xlu0 %1324, %v1186
        %v1326 = vpop.permute.xlu0 %1325
        %v1329 = vperm.slane %v1178, 0
        %v1330 = vperm.slane %v1178, 1
        %v1333 = vsub.f32 %v1298, %v1329
        %v1334 = vsub.f32 %v1298, %v1330
        %v1335 = vsub.f32 %v1302, %v1329
        %v1336 = vsub.f32 %v1302, %v1330
        %v1337 = vsub.f32 %v1306, %v1329
        %v1338 = vsub.f32 %v1306, %v1330
        %v1339 = vsub.f32 %v1310, %v1329
        %v1340 = vsub.f32 %v1310, %v1330
        %v1341 = vsub.f32 %v1314, %v1329
        %v1342 = vsub.f32 %v1314, %v1330
        %v1343 = vsub.f32 %v1318, %v1329
        %v1344 = vsub.f32 %v1318, %v1330
        %v1345 = vsub.f32 %v1322, %v1329
        %v1346 = vsub.f32 %v1322, %v1330
        %v1347 = vsub.f32 %v1326, %v1329
        %v1348 = vsub.f32 %v1326, %v1330
        %v1349 = vand.u32 2147483647, %v1333
        %v1350 = vand.u32 2147483647, %v1334
        %v1351 = vand.u32 2147483647, %v1335
        %v1352 = vand.u32 2147483647, %v1336
        %v1353 = vand.u32 2147483647, %v1337
        %v1354 = vand.u32 2147483647, %v1338
        %v1355 = vand.u32 2147483647, %v1339
        %v1356 = vand.u32 2147483647, %v1340
        %v1357 = vand.u32 2147483647, %v1341
        %v1358 = vand.u32 2147483647, %v1342
        %v1359 = vand.u32 2147483647, %v1343
        %v1360 = vand.u32 2147483647, %v1344
        %v1361 = vand.u32 2147483647, %v1345
        %v1362 = vand.u32 2147483647, %v1346
        %v1363 = vand.u32 2147483647, %v1347
        %v1364 = vand.u32 2147483647, %v1348
        %v1365 = vsub.f32 1.0, %v1349
        %v1366 = vsub.f32 1.0, %v1350
        %v1367 = vsub.f32 1.0, %v1351
        %v1368 = vsub.f32 1.0, %v1352
        %v1369 = vsub.f32 1.0, %v1353
        %v1370 = vsub.f32 1.0, %v1354
        %v1371 = vsub.f32 1.0, %v1355
        %v1372 = vsub.f32 1.0, %v1356
        %v1373 = vsub.f32 1.0, %v1357
        %v1374 = vsub.f32 1.0, %v1358
        %v1375 = vsub.f32 1.0, %v1359
        %v1376 = vsub.f32 1.0, %v1360
        %v1377 = vsub.f32 1.0, %v1361
        %v1378 = vsub.f32 1.0, %v1362
        %v1379 = vsub.f32 1.0, %v1363
        %v1380 = vsub.f32 1.0, %v1364
        %v1381 = vmax.f32 %v1365, 0.0
        %v1382 = vmax.f32 %v1366, 0.0
        %v1383 = vmax.f32 %v1367, 0.0
        %v1384 = vmax.f32 %v1368, 0.0
        %v1385 = vmax.f32 %v1369, 0.0
        %v1386 = vmax.f32 %v1370, 0.0
        %v1387 = vmax.f32 %v1371, 0.0
        %v1388 = vmax.f32 %v1372, 0.0
        %v1389 = vmax.f32 %v1373, 0.0
        %v1390 = vmax.f32 %v1374, 0.0
        %v1391 = vmax.f32 %v1375, 0.0
        %v1392 = vmax.f32 %v1376, 0.0
        %v1393 = vmax.f32 %v1377, 0.0
        %v1394 = vmax.f32 %v1378, 0.0
        %v1395 = vmax.f32 %v1379, 0.0
        %v1396 = vmax.f32 %v1380, 0.0
        %v1397 = vmul.f32 %v1280, %v1381
        %v1398 = vmul.f32 %v1281, %v1382
        %v1399 = vmul.f32 %v1282, %v1383
        %v1400 = vmul.f32 %v1283, %v1384
        %v1401 = vmul.f32 %v1284, %v1385
        %v1402 = vmul.f32 %v1285, %v1386
        %v1403 = vmul.f32 %v1286, %v1387
        %v1404 = vmul.f32 %v1287, %v1388
        %v1405 = vmul.f32 %v1288, %v1389
        %v1406 = vmul.f32 %v1289, %v1390
        %v1407 = vmul.f32 %v1290, %v1391
        %v1408 = vmul.f32 %v1291, %v1392
        %v1409 = vmul.f32 %v1292, %v1393
        %v1410 = vmul.f32 %v1293, %v1394
        %v1411 = vmul.f32 %v1294, %v1395
        %v1412 = vmul.f32 %v1295, %v1396
        %v1413 = vsel %vm437, %v339, 0
        %1415 = vmatpush.msra.mxu0 0.0
        %1416 = vmatpush.msra.mxu0 0.0
        %1417 = vmatpush.msra.mxu0 0.0
        %1418 = vmatpush.msra.mxu0 0.0
        %1419 = vmatpush.msra.mxu0 0.0
        %1420 = vmatpush.msra.mxu0 0.0
        %1421 = vmatpush.msra.mxu0 0.0
        %1422 = vmatpush.msra.mxu0 0.0
        %1423 = vmatpush.msra.mxu0 %v1411
        %1424 = vmatpush.msra.mxu0 %v1409
        %1425 = vmatpush.msra.mxu0 %v1407
        %1426 = vmatpush.msra.mxu0 %v1405
        %1427 = vmatpush.msra.mxu0 %v1403
        %1428 = vmatpush.msra.mxu0 %v1401
        %1429 = vmatpush.msra.mxu0 %v1399
        %1430 = vmatpush.msra.mxu0 %v1397
        %1431 = vmatmul.f32.gmra.mxu0 %v1413
        %v1432 = vpop.f32.mrf.mxu0
        %v1433 = vadd.f32 0.0, %v1432
        %1434 = vdwg.mxu0
        %1435 = vmatpush.msra.mxu0 0.0
        %1436 = vmatpush.msra.mxu0 0.0
        %1437 = vmatpush.msra.mxu0 0.0
        %1438 = vmatpush.msra.mxu0 0.0
        %1439 = vmatpush.msra.mxu0 0.0
        %1440 = vmatpush.msra.mxu0 0.0
        %1441 = vmatpush.msra.mxu0 0.0
        %1442 = vmatpush.msra.mxu0 0.0
        %1443 = vmatpush.msra.mxu0 %v1412
        %1444 = vmatpush.msra.mxu0 %v1410
        %1445 = vmatpush.msra.mxu0 %v1408
        %1446 = vmatpush.msra.mxu0 %v1406
        %1447 = vmatpush.msra.mxu0 %v1404
        %1448 = vmatpush.msra.mxu0 %v1402
        %1449 = vmatpush.msra.mxu0 %v1400
        %1450 = vmatpush.msra.mxu0 %v1398
        %1451 = vmatmul.f32.gmra.mxu0 %v1413
        %v1452 = vpop.f32.mrf.mxu0
        %v1453 = vadd.f32 0.0, %v1452
        %1454 = vdwg.mxu0
        %v1457 = vrot.slane %v1453, 4
        %v1458 = vsel %vm349, %v1433, %v1457
        %1460 = vst [vmem:[%s328] sm:$0xff] %v1458
        %s1461 = sand.u32 %s209, 1
        %s1462 = scalar_lea.sflag [#allocation5], %s1461
        %s1463 = sand.u32 %s209, 1
        %s1464 = smul.addr %s1463, 8
        %s1465 = scalar_lea.vmem [#allocation6], %s1464
        // Predicated region
        $region57: #{tpu_custom_call.1} parent=51 // pred_check
          %p1466 = pneg %p219
        $region58: #{tpu_custom_call.1} parent=51 // pred_check_branch
          %1468 = sbr.rel (%p1466) target = $region60
        $region59: #{tpu_custom_call.1} parent=51 // pred_region
          %1470 = vsyncadd %s1462, 0
          %s1471 = smul.addr %s23, 2
          %s1472 = smul.addr %s1471, 4
          %s1473 = scalar_lea.hbm %s8, %s1472
          %s1475 = sshll.u32 %s1465, 4
          %s1476 = int_to_ptr.vmem [resolvable:$true] %s1475
          %s1477 = sshll.u32 %s1473, 4
          %s1478 = int_to_ptr.hbm [resolvable:$true] %s1477
          %1480 = dma.vmem_to_hbm [thread:$0]  %s1476, 128, %s1478, %s1462
        $region60: #{tpu_custom_call.1} parent=51 // pred_fallthru
          _
      $region52: #{tpu_custom_call.1} parent=5 // pred_fallthru
        _
      %p1481 = scmp.le.s32.totalorder 2, %s18
      // Predicated region
      $region61: #{tpu_custom_call.1} parent=5 // pred_check
        %p1482 = pneg %p1481
      $region62: #{tpu_custom_call.1} parent=5 // pred_check_branch
        %1484 = sbr.rel (%p1482) target = $region64
      $region63: #{tpu_custom_call.1} parent=5 // pred_region
        %s1485 = ssub.s32 %s18, 2
        // Predicated region
        $region65: #{tpu_custom_call.1} parent=63 // pred_check
          %p1486 = pneg %p225
        $region66: #{tpu_custom_call.1} parent=63 // pred_check_branch
          %1488 = sbr.rel (%p1486) target = $region68
        $region67: #{tpu_custom_call.1} parent=63 // pred_region
          %s1489 = sand.u32 %s210, 1
          %s1490 = scalar_lea.sflag [#allocation5], %s1489
          %s1491 = sand.u32 %s210, 1
          %s1492 = smul.addr %s1491, 8
          %s1493 = scalar_lea.vmem [#allocation6], %s1492
          %1495 = dma.done %s1490, 128
        $region68: #{tpu_custom_call.1} parent=63 // pred_fallthru
          _
      $region64: #{tpu_custom_call.1} parent=5 // pred_fallthru
        _
    $region6: #{tpu_custom_call.1} parent=1 // loop_footer
      %s22 = sadd.s32 1, %s18
    $region7: #{tpu_custom_call.1} parent=1 // loop_footer_branch
      %17 = sbr.rel target = $region3
    $region8: #{tpu_custom_call.1} parent=1 // loop_exit
      _
    %1496 = vsyncpa [#allocation4], 1
    %s1497 = scalar_lea.sflag [#allocation4], 1
    %1498 = vsyncpa %s1497, 1
    %1499 = vsyncpa [#allocation5], 1
    %s1500 = scalar_lea.sflag [#allocation5], 1
    %1501 = vsyncpa %s1500, 1

</llo_original>
